<compile_context>
chip_gen: v5e
topology: v5e:2x2
jax: 0.10.0
libtpu: 0.0.40
codegen_flags: <defaults>
</compile_context>

<pallas_src>
import functools

import jax
import jax.numpy as jnp
from jax.experimental import pallas as pl
from jax.experimental.pallas import tpu as pltpu


def _rotl32(x, r):
    r = jnp.uint32(r)
    return (x << r) | (x >> (jnp.uint32(32) - r))


def _threefry2x32_8(c0, c1, k0, k1):
    """8-round Threefry-2x32 counter hash (add/xor/shift only -> VPU friendly)."""
    ks2 = k0 ^ k1 ^ jnp.uint32(0x1BD11BDA)
    x0 = c0 + k0
    x1 = c1 + k1
    for r in (13, 15, 26, 6):
        x0 = x0 + x1
        x1 = _rotl32(x1, r) ^ x0
    x0 = x0 + k1
    x1 = x1 + ks2 + jnp.uint32(1)
    for r in (17, 29, 16, 24):
        x0 = x0 + x1
        x1 = _rotl32(x1, r) ^ x0
    x0 = x0 + ks2
    x1 = x1 + k0 + jnp.uint32(2)
    return x0, x1


def _u32_to_unit_float(bits):
    # uniform float32 in [0, 1): exponent of 1.0f, random 23-bit mantissa, -1.
    mant = (bits >> jnp.uint32(9)) | jnp.uint32(0x3F800000)
    return jax.lax.bitcast_convert_type(mant, jnp.float32) - 1.0


def patch_embed_kernel(seed_ref, x_ref, o_ref, *, noise_std):
    """x_ref / o_ref block: (block_rows, lanes). seed_ref: (1,) int32 in SMEM."""
    brows, bcols = x_ref.shape
    paired = (bcols % 2 == 0)                 # static Python branch
    half = bcols // 2 if paired else bcols
    pairs_per_block = brows * half

    # Global pair index: noise depends only on (seed, element index), not on
    # the chosen tiling.
    tile = pl.program_id(0)
    row_ids = jax.lax.broadcasted_iota(jnp.int32, (brows, half), 0)
    col_ids = jax.lax.broadcasted_iota(jnp.int32, (brows, half), 1)
    ctr_i32 = tile * pairs_per_block + row_ids * half + col_ids
    counter = jax.lax.bitcast_convert_type(ctr_i32, jnp.uint32)

    seed_i32 = jnp.full((brows, half), seed_ref[0], dtype=jnp.int32)
    seed_u32 = jax.lax.bitcast_convert_type(seed_i32, jnp.uint32)

    b0, b1 = _threefry2x32_8(
        counter, seed_u32, jnp.uint32(0x9E3779B9), jnp.uint32(0xBB67AE85))

    # Box-Muller: two standard normals per (u1, u2) pair.
    u1 = 1.0 - _u32_to_unit_float(b0)         # (0, 1] -> log is safe
    u2 = _u32_to_unit_float(b1)               # [0, 1)
    r = jnp.sqrt(-2.0 * jnp.log(u1))
    theta = jnp.float32(2.0 * jnp.pi) * u2
    std = jnp.float32(noise_std)

    if paired:
        noise = jnp.concatenate([r * jnp.cos(theta), r * jnp.sin(theta)], axis=-1)
    else:
        noise = r * jnp.cos(theta)            # odd lane count: drop the sin half

    x = x_ref[...].astype(jnp.float32)        # keep the add in f32 even for bf16 I/O
    o_ref[...] = (x + noise * std).astype(o_ref.dtype)


def patch_embed_forward(img, seed, *, num_patches, d_patch, noise_std):
    """img: (B, C, H, W). Returns reshape(img, (B, num_patches, d_patch)) + N(0, std)."""
    B = img.shape[0]
    x = jnp.reshape(img, (B, num_patches, d_patch))   # row-major == torch.reshape
    total = B * num_patches * d_patch

    # Lane-dense retiling: purely elementwise op, so flatten to (rows, lanes)
    # with a 128-multiple last dim whenever possible (unmasked full-width vst).
    lanes = d_patch
    for cand in (1024, 512, 256, 128):
        if total % cand == 0:
            lanes = cand
            break
    rows = total // lanes
    x2d = jnp.reshape(x, (rows, lanes))

    # ~1 MiB f32 blocks: big enough to approach HBM roofline, small enough that
    # double-buffered in+out fits every generation's default VMEM budget.
    bytes_per_row = lanes * jnp.dtype(x2d.dtype).itemsize
    target_rows = max(8, (1 << 20) // bytes_per_row)
    if rows <= target_rows:
        block_rows = rows                     # single full-extent block
    else:
        block_rows = (target_rows // 8) * 8   # sublane dim stays a multiple of 8
    grid = (pl.cdiv(rows, block_rows),)

    kernel = functools.partial(patch_embed_kernel, noise_std=noise_std)
    grid_spec = pltpu.PrefetchScalarGridSpec(
        num_scalar_prefetch=1,
        grid=grid,
        in_specs=[pl.BlockSpec((block_rows, lanes), lambda i, seed_ref: (i, 0))],
        out_specs=pl.BlockSpec((block_rows, lanes), lambda i, seed_ref: (i, 0)),
    )
    out2d = pl.pallas_call(
        kernel,
        out_shape=jax.ShapeDtypeStruct((rows, lanes), x2d.dtype),
        grid_spec=grid_spec,
        # x2d (input index 1, after the scalar-prefetch seed) aliases output 0:
        # out = in + noise with identical tiling -> reuse the HBM buffer.
        input_output_aliases={1: 0},
        compiler_params=pltpu.CompilerParams(dimension_semantics=("parallel",)),
    )(jnp.asarray([seed], jnp.int32), x2d)

    return jnp.reshape(out2d, (B, num_patches, d_patch))


if __name__ == "__main__":
    # Config consistent with the module:
    # img_size=16, patch_size=4, n_channels=4, batch_size=2, noise_std=0.1
    B, C, H, W = 2, 4, 16, 16
    patch_size = 4
    num_patches = (H // patch_size) * (W // patch_size)   # 16
    d_patch = patch_size * patch_size * C                 # 64
    noise_std = 0.1

    key = jax.random.PRNGKey(0)
    img = jax.random.normal(key, (B, C, H, W), dtype=jnp.float32)

    out = patch_embed_forward(
        img, seed=0, num_patches=num_patches, d_patch=d_patch, noise_std=noise_std
    )
    out = jax.block_until_ready(out)

    # Sanity: shape/dtype match the reshape; output differs from the noiseless
    # reshape only by small Gaussian noise of roughly the requested std.
    ref = jnp.reshape(img, (B, num_patches, d_patch))
    assert out.shape == (B, num_patches, d_patch)
    assert out.dtype == jnp.float32
    noise = out - ref
    max_dev = float(jnp.max(jnp.abs(noise)))
    noise_sd = float(jnp.std(noise))
    assert 0.0 < max_dev < 1.0, max_dev
    assert 0.03 < noise_sd < 0.3, noise_sd

    print("KERNEL_OK")
</pallas_src>

<mosaic_0001>
module attributes {stable_mosaic.version = 11 : i64} {
  func.func @patch_embed_kernel(%arg0: i32, %arg1: memref<1xi32, #tpu.memory_space<smem>>, %arg2: memref<2x1024xf32, #tpu.memory_space<vmem>>, %arg3: memref<2x1024xf32, #tpu.memory_space<vmem>>) attributes {dimension_semantics = [#tpu.dimension_semantics<parallel>], iteration_bounds = array<i64: 1>, scalar_prefetch = 1 : i64, scratch_operands = 0 : i64, tpu.core_type = #tpu.core_type<tc>, window_params = [{transform_indices = @transform_0, window_bounds = array<i64: 2, 1024>}, {transform_indices = @transform_1, window_bounds = array<i64: 2, 1024>}]} {
    %0 = tpu.iota {dimensions = array<i32: 0>} : vector<2x512xi32>
    %1 = tpu.iota {dimensions = array<i32: 1>} : vector<2x512xi32>
    %c1024_i32 = arith.constant 1024 : i32
    %2 = arith.muli %arg0, %c1024_i32 : i32
    %c512_i32 = arith.constant 512 : i32
    %3 = vector.broadcast %c512_i32 : i32 to vector<2x512xi32>
    %4 = arith.muli %0, %3 : vector<2x512xi32>
    %5 = vector.broadcast %2 : i32 to vector<2x512xi32>
    %6 = arith.addi %5, %4 : vector<2x512xi32>
    %7 = arith.addi %6, %1 : vector<2x512xi32>
    %8 = tpu.bitcast %7 : vector<2x512xi32> -> vector<2x512xi32>
    %c0 = arith.constant 0 : index
    %9 = memref.load %arg1[%c0] : memref<1xi32, #tpu.memory_space<smem>>
    %10 = vector.broadcast %9 : i32 to vector<2x512xi32>
    %11 = tpu.bitcast %10 : vector<2x512xi32> -> vector<2x512xi32>
    %c-1640531527_i32 = arith.constant -1640531527 : i32
    %c-1150833019_i32 = arith.constant -1150833019 : i32
    %12 = arith.xori %c-1640531527_i32, %c-1150833019_i32 : i32
    %c466688986_i32 = arith.constant 466688986 : i32
    %13 = arith.xori %12, %c466688986_i32 : i32
    %c-1640531527_i32_0 = arith.constant -1640531527 : i32
    %14 = vector.broadcast %c-1640531527_i32_0 : i32 to vector<2x512xi32>
    %15 = arith.addi %8, %14 : vector<2x512xi32>
    %c-1150833019_i32_1 = arith.constant -1150833019 : i32
    %16 = vector.broadcast %c-1150833019_i32_1 : i32 to vector<2x512xi32>
    %17 = arith.addi %11, %16 : vector<2x512xi32>
    %18 = arith.addi %15, %17 : vector<2x512xi32>
    %c13_i32 = arith.constant 13 : i32
    %19 = vector.broadcast %c13_i32 : i32 to vector<2x512xi32>
    %20 = arith.shli %17, %19 : vector<2x512xi32>
    %c32_i32 = arith.constant 32 : i32
    %c13_i32_2 = arith.constant 13 : i32
    %21 = arith.subi %c32_i32, %c13_i32_2 : i32
    %22 = vector.broadcast %21 : i32 to vector<2x512xi32>
    %23 = arith.shrui %17, %22 : vector<2x512xi32>
    %24 = arith.ori %20, %23 : vector<2x512xi32>
    %25 = arith.xori %24, %18 : vector<2x512xi32>
    %26 = arith.addi %18, %25 : vector<2x512xi32>
    %c15_i32 = arith.constant 15 : i32
    %27 = vector.broadcast %c15_i32 : i32 to vector<2x512xi32>
    %28 = arith.shli %25, %27 : vector<2x512xi32>
    %c32_i32_3 = arith.constant 32 : i32
    %c15_i32_4 = arith.constant 15 : i32
    %29 = arith.subi %c32_i32_3, %c15_i32_4 : i32
    %30 = vector.broadcast %29 : i32 to vector<2x512xi32>
    %31 = arith.shrui %25, %30 : vector<2x512xi32>
    %32 = arith.ori %28, %31 : vector<2x512xi32>
    %33 = arith.xori %32, %26 : vector<2x512xi32>
    %34 = arith.addi %26, %33 : vector<2x512xi32>
    %c26_i32 = arith.constant 26 : i32
    %35 = vector.broadcast %c26_i32 : i32 to vector<2x512xi32>
    %36 = arith.shli %33, %35 : vector<2x512xi32>
    %c32_i32_5 = arith.constant 32 : i32
    %c26_i32_6 = arith.constant 26 : i32
    %37 = arith.subi %c32_i32_5, %c26_i32_6 : i32
    %38 = vector.broadcast %37 : i32 to vector<2x512xi32>
    %39 = arith.shrui %33, %38 : vector<2x512xi32>
    %40 = arith.ori %36, %39 : vector<2x512xi32>
    %41 = arith.xori %40, %34 : vector<2x512xi32>
    %42 = arith.addi %34, %41 : vector<2x512xi32>
    %c6_i32 = arith.constant 6 : i32
    %43 = vector.broadcast %c6_i32 : i32 to vector<2x512xi32>
    %44 = arith.shli %41, %43 : vector<2x512xi32>
    %c32_i32_7 = arith.constant 32 : i32
    %c6_i32_8 = arith.constant 6 : i32
    %45 = arith.subi %c32_i32_7, %c6_i32_8 : i32
    %46 = vector.broadcast %45 : i32 to vector<2x512xi32>
    %47 = arith.shrui %41, %46 : vector<2x512xi32>
    %48 = arith.ori %44, %47 : vector<2x512xi32>
    %49 = arith.xori %48, %42 : vector<2x512xi32>
    %c-1150833019_i32_9 = arith.constant -1150833019 : i32
    %50 = vector.broadcast %c-1150833019_i32_9 : i32 to vector<2x512xi32>
    %51 = arith.addi %42, %50 : vector<2x512xi32>
    %52 = vector.broadcast %13 : i32 to vector<2x512xi32>
    %53 = arith.addi %49, %52 : vector<2x512xi32>
    %c1_i32 = arith.constant 1 : i32
    %54 = vector.broadcast %c1_i32 : i32 to vector<2x512xi32>
    %55 = arith.addi %53, %54 : vector<2x512xi32>
    %56 = arith.addi %51, %55 : vector<2x512xi32>
    %c17_i32 = arith.constant 17 : i32
    %57 = vector.broadcast %c17_i32 : i32 to vector<2x512xi32>
    %58 = arith.shli %55, %57 : vector<2x512xi32>
    %c32_i32_10 = arith.constant 32 : i32
    %c17_i32_11 = arith.constant 17 : i32
    %59 = arith.subi %c32_i32_10, %c17_i32_11 : i32
    %60 = vector.broadcast %59 : i32 to vector<2x512xi32>
    %61 = arith.shrui %55, %60 : vector<2x512xi32>
    %62 = arith.ori %58, %61 : vector<2x512xi32>
    %63 = arith.xori %62, %56 : vector<2x512xi32>
    %64 = arith.addi %56, %63 : vector<2x512xi32>
    %c29_i32 = arith.constant 29 : i32
    %65 = vector.broadcast %c29_i32 : i32 to vector<2x512xi32>
    %66 = arith.shli %63, %65 : vector<2x512xi32>
    %c32_i32_12 = arith.constant 32 : i32
    %c29_i32_13 = arith.constant 29 : i32
    %67 = arith.subi %c32_i32_12, %c29_i32_13 : i32
    %68 = vector.broadcast %67 : i32 to vector<2x512xi32>
    %69 = arith.shrui %63, %68 : vector<2x512xi32>
    %70 = arith.ori %66, %69 : vector<2x512xi32>
    %71 = arith.xori %70, %64 : vector<2x512xi32>
    %72 = arith.addi %64, %71 : vector<2x512xi32>
    %c16_i32 = arith.constant 16 : i32
    %73 = vector.broadcast %c16_i32 : i32 to vector<2x512xi32>
    %74 = arith.shli %71, %73 : vector<2x512xi32>
    %c32_i32_14 = arith.constant 32 : i32
    %c16_i32_15 = arith.constant 16 : i32
    %75 = arith.subi %c32_i32_14, %c16_i32_15 : i32
    %76 = vector.broadcast %75 : i32 to vector<2x512xi32>
    %77 = arith.shrui %71, %76 : vector<2x512xi32>
    %78 = arith.ori %74, %77 : vector<2x512xi32>
    %79 = arith.xori %78, %72 : vector<2x512xi32>
    %80 = arith.addi %72, %79 : vector<2x512xi32>
    %c24_i32 = arith.constant 24 : i32
    %81 = vector.broadcast %c24_i32 : i32 to vector<2x512xi32>
    %82 = arith.shli %79, %81 : vector<2x512xi32>
    %c32_i32_16 = arith.constant 32 : i32
    %c24_i32_17 = arith.constant 24 : i32
    %83 = arith.subi %c32_i32_16, %c24_i32_17 : i32
    %84 = vector.broadcast %83 : i32 to vector<2x512xi32>
    %85 = arith.shrui %79, %84 : vector<2x512xi32>
    %86 = arith.ori %82, %85 : vector<2x512xi32>
    %87 = arith.xori %86, %80 : vector<2x512xi32>
    %88 = vector.broadcast %13 : i32 to vector<2x512xi32>
    %89 = arith.addi %80, %88 : vector<2x512xi32>
    %c-1640531527_i32_18 = arith.constant -1640531527 : i32
    %90 = vector.broadcast %c-1640531527_i32_18 : i32 to vector<2x512xi32>
    %91 = arith.addi %87, %90 : vector<2x512xi32>
    %c2_i32 = arith.constant 2 : i32
    %92 = vector.broadcast %c2_i32 : i32 to vector<2x512xi32>
    %93 = arith.addi %91, %92 : vector<2x512xi32>
    %c9_i32 = arith.constant 9 : i32
    %94 = vector.broadcast %c9_i32 : i32 to vector<2x512xi32>
    %95 = arith.shrui %89, %94 : vector<2x512xi32>
    %c1065353216_i32 = arith.constant 1065353216 : i32
    %96 = vector.broadcast %c1065353216_i32 : i32 to vector<2x512xi32>
    %97 = arith.ori %95, %96 : vector<2x512xi32>
    %98 = tpu.bitcast %97 : vector<2x512xi32> -> vector<2x512xf32>
    %cst = arith.constant 1.000000e+00 : f32
    %99 = vector.broadcast %cst : f32 to vector<2x512xf32>
    %100 = arith.subf %98, %99 : vector<2x512xf32>
    %cst_19 = arith.constant 1.000000e+00 : f32
    %101 = vector.broadcast %cst_19 : f32 to vector<2x512xf32>
    %102 = arith.subf %101, %100 : vector<2x512xf32>
    %c9_i32_20 = arith.constant 9 : i32
    %103 = vector.broadcast %c9_i32_20 : i32 to vector<2x512xi32>
    %104 = arith.shrui %93, %103 : vector<2x512xi32>
    %c1065353216_i32_21 = arith.constant 1065353216 : i32
    %105 = vector.broadcast %c1065353216_i32_21 : i32 to vector<2x512xi32>
    %106 = arith.ori %104, %105 : vector<2x512xi32>
    %107 = tpu.bitcast %106 : vector<2x512xi32> -> vector<2x512xf32>
    %cst_22 = arith.constant 1.000000e+00 : f32
    %108 = vector.broadcast %cst_22 : f32 to vector<2x512xf32>
    %109 = arith.subf %107, %108 : vector<2x512xf32>
    %110 = math.log %102 : vector<2x512xf32>
    %cst_23 = arith.constant -2.000000e+00 : f32
    %111 = vector.broadcast %cst_23 : f32 to vector<2x512xf32>
    %112 = arith.mulf %111, %110 : vector<2x512xf32>
    %113 = math.sqrt %112 : vector<2x512xf32>
    %cst_24 = arith.constant 6.28318548 : f32
    %114 = vector.broadcast %cst_24 : f32 to vector<2x512xf32>
    %115 = arith.mulf %114, %109 : vector<2x512xf32>
    %116 = math.cos %115 : vector<2x512xf32>
    %117 = arith.mulf %113, %116 : vector<2x512xf32>
    %118 = math.sin %115 : vector<2x512xf32>
    %119 = arith.mulf %113, %118 : vector<2x512xf32>
    %120 = tpu.concatenate %117, %119 in 1 : vector<2x512xf32>, vector<2x512xf32> -> vector<2x1024xf32>
    %c0_25 = arith.constant 0 : index
    %c0_26 = arith.constant 0 : index
    %121 = vector.load %arg2[%c0_25, %c0_26] : memref<2x1024xf32, #tpu.memory_space<vmem>>, vector<2x1024xf32>
    %cst_27 = arith.constant 1.000000e-01 : f32
    %122 = vector.broadcast %cst_27 : f32 to vector<2x1024xf32>
    %123 = arith.mulf %120, %122 : vector<2x1024xf32>
    %124 = arith.addf %121, %123 : vector<2x1024xf32>
    %c0_28 = arith.constant 0 : index
    %c0_29 = arith.constant 0 : index
    %125 = vector.load %arg3[%c0_28, %c0_29] : memref<2x1024xf32, #tpu.memory_space<vmem>>, vector<2x1024xf32>
    tpu.vector_store %arg3[%c0_28, %c0_29], %124 {strides = array<i32>} : memref<2x1024xf32, #tpu.memory_space<vmem>>, vector<2x1024xf32>,
    return
  }
  func.func @transform_0(%arg0: i32, %arg1: memref<1xi32, #tpu.memory_space<smem>>) -> (i32, i32) {
    %c0_i32 = arith.constant 0 : i32
    %c0_i32_0 = arith.constant 0 : i32
    return %arg0, %c0_i32 : i32, i32
  }
  func.func @transform_1(%arg0: i32, %arg1: memref<1xi32, #tpu.memory_space<smem>>) -> (i32, i32) {
    %c0_i32 = arith.constant 0 : i32
    %c0_i32_0 = arith.constant 0 : i32
    return %arg0, %c0_i32 : i32, i32
  }
}

</mosaic_0001>

<llo_original>
// kernel: tpu_custom_call.1
$region0: #{tpu_custom_call.1}
  #allocation0 [shape = 'u32[]', space=smem, size = 0x4, offset = 0x4, fixed_abs, tag = 'smem constant byte address 0x4 - core index']
  #allocation1 [shape = 'u32[72,128]{1,0:T(1,128)}', space=vmem, size = 0x9000, scoped, tag = 'internal scratch']
  #allocation2 [shape = 's32[1]{0}', space=sflag, size = 0x4, scoped, tag = 'scoped memory for tpu_custom_call.1']
  #allocation3 [shape = 's32[1]{0:T(128)S(6)}', space=smem, size = 0x200, scoped, tag = 'prefetched SMEM operand 0']
  %s0 = inlined_call_operand.<no memory space> [shape: s32[1], index: 0, kind: input, shape index: {}]
  %s1 = inlined_call_operand.hbm [shape: f32[2,1024], index: 1, kind: input, shape index: {}, may-alias: {1,2}]
  %s2 = inlined_call_operand.hbm [shape: f32[2,1024], index: 2, kind: output, shape index: {}, may-alias: {1,2}]
  %s3 = sld [smem:[#allocation0]]
  $region18: #{tpu_custom_call.1} parent=0
    _
  %s5 = ssub.s32 1, %s3
  %s6 = scalar_select 0, %s5, %s3
  %7 = sst [smem:[#allocation3]] %s0
  $region1: #{tpu_custom_call.1} parent=0
    #allocation4 [shape = 'u8[8192]{0}', space=vmem, size = 0x2000, scoped, tag = 'input window, operand 1, single buffered']
    #allocation5 [shape = 's32[1]{0}', space=sflag, size = 0x4, scoped, tag = 'scoped memory for tpu_custom_call.1']
    #allocation6 [shape = 's32[1]{0}', space=sflag, size = 0x4, scoped, tag = 'scoped memory for tpu_custom_call.1']
    #allocation7 [shape = 'u8[8192]{0}', space=vmem, size = 0x2000, scoped, tag = 'output window, operand 0, single buffered']
    %8 = vsyncpa [#allocation5], 0
    %9 = vsyncpa [#allocation6], 0
    // Predicated region
    $region2: #{tpu_custom_call.1} parent=1 // pred_check
      _
    $region3: #{tpu_custom_call.1} parent=1 // pred_check_branch
      %11 = sbr.rel (0) target = $region5
    $region4: #{tpu_custom_call.1} parent=1 // pred_region
      %13 = vsyncadd [#allocation5], 0
      %s15 = sshll.u32 %s1, 4
      %s16 = int_to_ptr.hbm [resolvable:$true] %s15
      %s17 = sshll.u32 [#allocation4], 4
      %s18 = int_to_ptr.vmem [resolvable:$true] %s17
      %20 = dma.hbm_to_vmem [thread:$0]  %s16, 256, %s18, [#allocation5]
    $region5: #{tpu_custom_call.1} parent=1 // pred_fallthru
      _
    // Predicated region
    $region6: #{tpu_custom_call.1} parent=1 // pred_check
      _
    $region7: #{tpu_custom_call.1} parent=1 // pred_check_branch
      %22 = sbr.rel (0) target = $region9
    $region8: #{tpu_custom_call.1} parent=1 // pred_region
      %24 = dma.done [#allocation5], 256
    $region9: #{tpu_custom_call.1} parent=1 // pred_fallthru
      _
    %v25 = vlaneseq
    %v26 = vshrl.u32 %v25, 7
    %v27 = vlaneseq
    %v28 = vand.u32 %v27, 127
    %v29 = vadd.s32 %v28, 128
    %v30 = vadd.s32 %v28, 256
    %v31 = vadd.s32 %v28, 384
    %s32 = smul.u32 0, 1024
    %v33 = vmul.u32 %v26, 512
    %v34 = vstv %s32
    %v35 = vadd.s32 %v34, %v33
    %v36 = vadd.s32 %v35, %v28
    %v37 = vadd.s32 %v35, %v29
    %v38 = vadd.s32 %v35, %v30
    %v39 = vadd.s32 %v35, %v31
    %s40 = sld [smem:[#allocation3]]
    %v41 = vstv %s40
    %v42 = vadd.s32 %v36, 2654435769
    %v43 = vadd.s32 %v37, 2654435769
    %v44 = vadd.s32 %v38, 2654435769
    %v45 = vadd.s32 %v39, 2654435769
    %v46 = vadd.s32 %v41, 3144134277
    %v47 = vadd.s32 %v42, %v46
    %v48 = vadd.s32 %v43, %v46
    %v49 = vadd.s32 %v44, %v46
    %v50 = vadd.s32 %v45, %v46
    %v51 = vshll.u32 %v46, 13
    %v52 = vshrl.u32 %v46, 19
    %v53 = vor.u32 %v51, %v52
    %v54 = vxor.u32 %v53, %v47
    %v55 = vxor.u32 %v53, %v48
    %v56 = vxor.u32 %v53, %v49
    %v57 = vxor.u32 %v53, %v50
    %v58 = vadd.s32 %v47, %v54
    %v59 = vadd.s32 %v48, %v55
    %v60 = vadd.s32 %v49, %v56
    %v61 = vadd.s32 %v50, %v57
    %v62 = vshll.u32 %v54, 15
    %v63 = vshll.u32 %v55, 15
    %v64 = vshll.u32 %v56, 15
    %v65 = vshll.u32 %v57, 15
    %v66 = vshrl.u32 %v54, 17
    %v67 = vshrl.u32 %v55, 17
    %v68 = vshrl.u32 %v56, 17
    %v69 = vshrl.u32 %v57, 17
    %v70 = vor.u32 %v62, %v66
    %v71 = vor.u32 %v63, %v67
    %v72 = vor.u32 %v64, %v68
    %v73 = vor.u32 %v65, %v69
    %v74 = vxor.u32 %v70, %v58
    %v75 = vxor.u32 %v71, %v59
    %v76 = vxor.u32 %v72, %v60
    %v77 = vxor.u32 %v73, %v61
    %v78 = vadd.s32 %v58, %v74
    %v79 = vadd.s32 %v59, %v75
    %v80 = vadd.s32 %v60, %v76
    %v81 = vadd.s32 %v61, %v77
    %v82 = vshll.u32 %v74, 26
    %v83 = vshll.u32 %v75, 26
    %v84 = vshll.u32 %v76, 26
    %v85 = vshll.u32 %v77, 26
    %v86 = vshrl.u32 %v74, 6
    %v87 = vshrl.u32 %v75, 6
    %v88 = vshrl.u32 %v76, 6
    %v89 = vshrl.u32 %v77, 6
    %v90 = vor.u32 %v82, %v86
    %v91 = vor.u32 %v83, %v87
    %v92 = vor.u32 %v84, %v88
    %v93 = vor.u32 %v85, %v89
    %v94 = vxor.u32 %v90, %v78
    %v95 = vxor.u32 %v91, %v79
    %v96 = vxor.u32 %v92, %v80
    %v97 = vxor.u32 %v93, %v81
    %v98 = vadd.s32 %v78, %v94
    %v99 = vadd.s32 %v79, %v95
    %v100 = vadd.s32 %v80, %v96
    %v101 = vadd.s32 %v81, %v97
    %v102 = vshll.u32 %v94, 6
    %v103 = vshll.u32 %v95, 6
    %v104 = vshll.u32 %v96, 6
    %v105 = vshll.u32 %v97, 6
    %v106 = vshrl.u32 %v94, 26
    %v107 = vshrl.u32 %v95, 26
    %v108 = vshrl.u32 %v96, 26
    %v109 = vshrl.u32 %v97, 26
    %v110 = vor.u32 %v102, %v106
    %v111 = vor.u32 %v103, %v107
    %v112 = vor.u32 %v104, %v108
    %v113 = vor.u32 %v105, %v109
    %v114 = vxor.u32 %v110, %v98
    %v115 = vxor.u32 %v111, %v99
    %v116 = vxor.u32 %v112, %v100
    %v117 = vxor.u32 %v113, %v101
    %v118 = vadd.s32 %v98, 3144134277
    %v119 = vadd.s32 %v99, 3144134277
    %v120 = vadd.s32 %v100, 3144134277
    %v121 = vadd.s32 %v101, 3144134277
    %v122 = vadd.s32 %v114, 1048693990
    %v123 = vadd.s32 %v115, 1048693990
    %v124 = vadd.s32 %v116, 1048693990
    %v125 = vadd.s32 %v117, 1048693990
    %v126 = vadd.s32 %v122, 1
    %v127 = vadd.s32 %v123, 1
    %v128 = vadd.s32 %v124, 1
    %v129 = vadd.s32 %v125, 1
    %v130 = vadd.s32 %v118, %v126
    %v131 = vadd.s32 %v119, %v127
    %v132 = vadd.s32 %v120, %v128
    %v133 = vadd.s32 %v121, %v129
    %v134 = vshll.u32 %v126, 17
    %v135 = vshll.u32 %v127, 17
    %v136 = vshll.u32 %v128, 17
    %v137 = vshll.u32 %v129, 17
    %v138 = vshrl.u32 %v126, 15
    %v139 = vshrl.u32 %v127, 15
    %v140 = vshrl.u32 %v128, 15
    %v141 = vshrl.u32 %v129, 15
    %v142 = vor.u32 %v134, %v138
    %v143 = vor.u32 %v135, %v139
    %v144 = vor.u32 %v136, %v140
    %v145 = vor.u32 %v137, %v141
    %v146 = vxor.u32 %v142, %v130
    %v147 = vxor.u32 %v143, %v131
    %v148 = vxor.u32 %v144, %v132
    %v149 = vxor.u32 %v145, %v133
    %v150 = vadd.s32 %v130, %v146
    %v151 = vadd.s32 %v131, %v147
    %v152 = vadd.s32 %v132, %v148
    %v153 = vadd.s32 %v133, %v149
    %v154 = vshll.u32 %v146, 29
    %v155 = vshll.u32 %v147, 29
    %v156 = vshll.u32 %v148, 29
    %v157 = vshll.u32 %v149, 29
    %v158 = vshrl.u32 %v146, 3
    %v159 = vshrl.u32 %v147, 3
    %v160 = vshrl.u32 %v148, 3
    %v161 = vshrl.u32 %v149, 3
    %v162 = vor.u32 %v154, %v158
    %v163 = vor.u32 %v155, %v159
    %v164 = vor.u32 %v156, %v160
    %v165 = vor.u32 %v157, %v161
    %v166 = vxor.u32 %v162, %v150
    %v167 = vxor.u32 %v163, %v151
    %v168 = vxor.u32 %v164, %v152
    %v169 = vxor.u32 %v165, %v153
    %v170 = vadd.s32 %v150, %v166
    %v171 = vadd.s32 %v151, %v167
    %v172 = vadd.s32 %v152, %v168
    %v173 = vadd.s32 %v153, %v169
    %v174 = vshll.u32 %v166, 16
    %v175 = vshll.u32 %v167, 16
    %v176 = vshll.u32 %v168, 16
    %v177 = vshll.u32 %v169, 16
    %v178 = vshrl.u32 %v166, 16
    %v179 = vshrl.u32 %v167, 16
    %v180 = vshrl.u32 %v168, 16
    %v181 = vshrl.u32 %v169, 16
    %v182 = vor.u32 %v174, %v178
    %v183 = vor.u32 %v175, %v179
    %v184 = vor.u32 %v176, %v180
    %v185 = vor.u32 %v177, %v181
    %v186 = vxor.u32 %v182, %v170
    %v187 = vxor.u32 %v183, %v171
    %v188 = vxor.u32 %v184, %v172
    %v189 = vxor.u32 %v185, %v173
    %v190 = vadd.s32 %v170, %v186
    %v191 = vadd.s32 %v171, %v187
    %v192 = vadd.s32 %v172, %v188
    %v193 = vadd.s32 %v173, %v189
    %v194 = vshll.u32 %v186, 24
    %v195 = vshll.u32 %v187, 24
    %v196 = vshll.u32 %v188, 24
    %v197 = vshll.u32 %v189, 24
    %v198 = vshrl.u32 %v186, 8
    %v199 = vshrl.u32 %v187, 8
    %v200 = vshrl.u32 %v188, 8
    %v201 = vshrl.u32 %v189, 8
    %v202 = vor.u32 %v194, %v198
    %v203 = vor.u32 %v195, %v199
    %v204 = vor.u32 %v196, %v200
    %v205 = vor.u32 %v197, %v201
    %v206 = vxor.u32 %v202, %v190
    %v207 = vxor.u32 %v203, %v191
    %v208 = vxor.u32 %v204, %v192
    %v209 = vxor.u32 %v205, %v193
    %v210 = vadd.s32 %v190, 1048693990
    %v211 = vadd.s32 %v191, 1048693990
    %v212 = vadd.s32 %v192, 1048693990
    %v213 = vadd.s32 %v193, 1048693990
    %v214 = vadd.s32 %v206, 2654435769
    %v215 = vadd.s32 %v207, 2654435769
    %v216 = vadd.s32 %v208, 2654435769
    %v217 = vadd.s32 %v209, 2654435769
    %v218 = vadd.s32 %v214, 2
    %v219 = vadd.s32 %v215, 2
    %v220 = vadd.s32 %v216, 2
    %v221 = vadd.s32 %v217, 2
    %v222 = vshrl.u32 %v210, 9
    %v223 = vshrl.u32 %v211, 9
    %v224 = vshrl.u32 %v212, 9
    %v225 = vshrl.u32 %v213, 9
    %v226 = vor.u32 %v222, 1065353216
    %v227 = vor.u32 %v223, 1065353216
    %v228 = vor.u32 %v224, 1065353216
    %v229 = vor.u32 %v225, 1065353216
    %v234 = vsub.f32 %v226, 1.0
    %v235 = vsub.f32 %v227, 1.0
    %v236 = vsub.f32 %v228, 1.0
    %v237 = vsub.f32 %v229, 1.0
    %v238 = vsub.f32 1.0, %v234
    %v239 = vsub.f32 1.0, %v235
    %v240 = vsub.f32 1.0, %v236
    %v241 = vsub.f32 1.0, %v237
    %v242 = vshrl.u32 %v218, 9
    %v243 = vshrl.u32 %v219, 9
    %v244 = vshrl.u32 %v220, 9
    %v245 = vshrl.u32 %v221, 9
    %v246 = vor.u32 %v242, 1065353216
    %v247 = vor.u32 %v243, 1065353216
    %v248 = vor.u32 %v244, 1065353216
    %v249 = vor.u32 %v245, 1065353216
    %v254 = vsub.f32 %v246, 1.0
    %v255 = vsub.f32 %v247, 1.0
    %v256 = vsub.f32 %v248, 1.0
    %v257 = vsub.f32 %v249, 1.0
    %v258 = vlog2.pop %v238
    %v259 = vmul.f32 %v258, 0.6931472
    %v260 = vlog2.pop %v239
    %v261 = vmul.f32 %v260, 0.6931472
    %v262 = vlog2.pop %v240
    %v263 = vmul.f32 %v262, 0.6931472
    %v264 = vlog2.pop %v241
    %v265 = vmul.f32 %v264, 0.6931472
    %v266 = vmul.f32 %v259, -2.0
    %v267 = vmul.f32 %v261, -2.0
    %v268 = vmul.f32 %v263, -2.0
    %v269 = vmul.f32 %v265, -2.0
    %v270 = vrsqrt.pop %v266
    %v271 = vmul.f32 %v270, %v266
    %v272 = vmul.f32 %v271, %v270
    %v273 = vmul.f32 0.5, %v272
    %v274 = vsub.f32 1.5, %v273
    %v275 = vmul.f32 %v270, %v274
    %v276 = vmul.f32 %v266, %v275
    %vm277 = vcmp.eq.f32.partialorder %v266, inf
    %v278 = vsel %vm277, %v266, %v276
    %vm279 = vcmp.eq.f32.partialorder %v266, 0.0
    %v280 = vand.u32 %v266, 2147483648
    %v281 = vsel %vm279, %v280, %v278
    %v282 = vrsqrt.pop %v267
    %v283 = vmul.f32 %v282, %v267
    %v284 = vmul.f32 %v283, %v282
    %v285 = vmul.f32 0.5, %v284
    %v286 = vsub.f32 1.5, %v285
    %v287 = vmul.f32 %v282, %v286
    %v288 = vmul.f32 %v267, %v287
    %vm289 = vcmp.eq.f32.partialorder %v267, inf
    %v290 = vsel %vm289, %v267, %v288
    %vm291 = vcmp.eq.f32.partialorder %v267, 0.0
    %v292 = vand.u32 %v267, 2147483648
    %v293 = vsel %vm291, %v292, %v290
    %v294 = vrsqrt.pop %v268
    %v295 = vmul.f32 %v294, %v268
    %v296 = vmul.f32 %v295, %v294
    %v297 = vmul.f32 0.5, %v296
    %v298 = vsub.f32 1.5, %v297
    %v299 = vmul.f32 %v294, %v298
    %v300 = vmul.f32 %v268, %v299
    %vm301 = vcmp.eq.f32.partialorder %v268, inf
    %v302 = vsel %vm301, %v268, %v300
    %vm303 = vcmp.eq.f32.partialorder %v268, 0.0
    %v304 = vand.u32 %v268, 2147483648
    %v305 = vsel %vm303, %v304, %v302
    %v306 = vrsqrt.pop %v269
    %v307 = vmul.f32 %v306, %v269
    %v308 = vmul.f32 %v307, %v306
    %v309 = vmul.f32 0.5, %v308
    %v310 = vsub.f32 1.5, %v309
    %v311 = vmul.f32 %v306, %v310
    %v312 = vmul.f32 %v269, %v311
    %vm313 = vcmp.eq.f32.partialorder %v269, inf
    %v314 = vsel %vm313, %v269, %v312
    %vm315 = vcmp.eq.f32.partialorder %v269, 0.0
    %v316 = vand.u32 %v269, 2147483648
    %v317 = vsel %vm315, %v316, %v314
    %v318 = vmul.f32 %v254, 6.2831855
    %v319 = vmul.f32 %v255, 6.2831855
    %v320 = vmul.f32 %v256, 6.2831855
    %v321 = vmul.f32 %v257, 6.2831855
    %v322 = vand.u32 2147483647, %v318
    %vm323 = vcmp.le.f32.partialorder %v322, 0.7853982
    %vm324 = vcmp.lt.s32.totalorder %v318, 0
    %v325 = vand.u32 %v318, 2139095040
    %v326 = vshrl.u32 %v325, 23
    %v327 = vsub.s32 %v326, 127
    %v328 = vand.u32 2147483647, %v318
    %v329 = vand.u32 %v328, 8388607
    %v330 = vor.u32 %v329, 8388608
    %v331 = vsub.s32 0, %v330
    %v332 = vadd.s32 %v327, 1
    %vm333 = vcmp.gt.s32.totalorder %v332, 0
    %v334 = vsel %vm333, %v332, 0
    %v335 = vshrl.u32 %v334, 5
    %v336 = vand.u32 %v334, 31
    %v337 = vsub.s32 32, %v336
    %v338 = vshrl.u32 683565275, %v337
    %v339 = vshll.u32 683565275, %v336
    %v340 = vshrl.u32 2475754826, %v337
    %v341 = vor.u32 %v339, %v340
    %v342 = vshll.u32 2475754826, %v336
    %v343 = vshrl.u32 2131351028, %v337
    %v344 = vor.u32 %v342, %v343
    %v345 = vshll.u32 2131351028, %v336
    %v346 = vshrl.u32 2102212464, %v337
    %v347 = vor.u32 %v345, %v346
    %v348 = vshll.u32 2102212464, %v336
    %v349 = vshrl.u32 920167782, %v337
    %v350 = vor.u32 %v348, %v349
    %v351 = vshll.u32 920167782, %v336
    %v352 = vshrl.u32 1326507024, %v337
    %v353 = vor.u32 %v351, %v352
    %vm354 = vcmp.lt.s32.totalorder %v335, 1
    %vm355 = vcmp.lt.s32.totalorder %v335, 2
    %vm356 = vcmp.lt.s32.totalorder %v335, 3
    %vm357 = vcmp.lt.s32.totalorder %v335, 4
    %v358 = vsel %vm354, %v338, %v341
    %v359 = vsel %vm357, %v347, 2102212464
    %v360 = vsel %vm356, %v344, %v359
    %v361 = vsel %vm355, %v358, %v360
    %v362 = vsel %vm354, %v341, %v344
    %v363 = vsel %vm357, %v350, 920167782
    %v364 = vsel %vm356, %v347, %v363
    %v365 = vsel %vm355, %v362, %v364
    %v366 = vsel %vm354, %v344, %v347
    %v367 = vsel %vm357, %v353, 1326507024
    %v368 = vsel %vm356, %v350, %v367
    %v369 = vsel %vm355, %v366, %v368
    %v370 = vshll.u32 %v330, 8
    %v371 = vand.u32 %v370, 65535
    %v372 = vshrl.u32 %v370, 16
    %v373 = vand.u32 %v369, 65535
    %v374 = vshrl.u32 %v369, 16
    %v375 = vmul.u32 %v371, %v373
    %v376 = vmul.u32 %v371, %v374
    %v377 = vmul.u32 %v372, %v373
    %v378 = vmul.u32 %v372, %v374
    %v379 = vshll.u32 %v376, 16
    %v380 = vshrl.u32 %v376, 16
    %v381 = vshll.u32 %v377, 16
    %v382 = vshrl.u32 %v377, 16
    %vm383 = vc.u32 %v375, %v379
    %v384 = vsel %vm383, 1, 0
    %v385 = vadd.s32 %v375, %v379
    %v386 = vadd.s32 %v378, %v384
    %vm387 = vc.u32 %v385, %v381
    %v388 = vsel %vm387, 1, 0
    %v389 = vadd.s32 %v385, %v381
    %v390 = vadd.s32 %v386, %v388
    %v391 = vadd.s32 %v390, %v380
    %v392 = vadd.s32 %v391, %v382
    %v393 = vand.u32 %v370, 65535
    %v394 = vshrl.u32 %v370, 16
    %v395 = vand.u32 %v365, 65535
    %v396 = vshrl.u32 %v365, 16
    %v397 = vmul.u32 %v393, %v395
    %v398 = vmul.u32 %v393, %v396
    %v399 = vmul.u32 %v394, %v395
    %v400 = vmul.u32 %v394, %v396
    %v401 = vshll.u32 %v398, 16
    %v402 = vshrl.u32 %v398, 16
    %v403 = vshll.u32 %v399, 16
    %v404 = vshrl.u32 %v399, 16
    %vm405 = vc.u32 %v397, %v401
    %v406 = vsel %vm405, 1, 0
    %v407 = vadd.s32 %v397, %v401
    %v408 = vadd.s32 %v400, %v406
    %vm409 = vc.u32 %v407, %v403
    %v410 = vsel %vm409, 1, 0
    %v411 = vadd.s32 %v407, %v403
    %v412 = vadd.s32 %v408, %v410
    %v413 = vadd.s32 %v412, %v402
    %v414 = vadd.s32 %v413, %v404
    %v415 = vmul.u32 %v370, %v361
    %v416 = vadd.s32 %v392, %v411
    %vm417 = vc.u32 %v392, %v411
    %v418 = vadd.s32 %v414, 1
    %v419 = vsel %vm417, %v418, %v414
    %v420 = vadd.s32 %v415, %v419
    %v421 = vadd.s32 %v420, 536870912
    %v422 = vshrl.u32 %v421, 30
    %v423 = vshll.u32 %v422, 30
    %v424 = vsub.s32 %v420, %v423
    %vm425 = vcmp.lt.s32.totalorder %v424, 0
    %v426 = vsub.s32 0, %v424
    %v427 = vsel %vm425, %v426, %v424
    %v428 = vclz %v427
    %v429 = vsub.s32 %v428, 2
    %vm430 = vcmp.gt.s32.totalorder 0, %v429
    %v431 = vsel %vm430, 0, %v429
    %v432 = vsub.s32 32, %v431
    %v433 = vshll.u32 %v424, %v431
    %v434 = vshrl.u32 %v416, %v432
    %v435 = vor.u32 %v433, %v434
    %v436 = vsub.s32 4294967266, %v431
    %v437 = vadd.s32 %v436, 127
    %v438 = vshll.u32 %v437, 23
    %v439 = vor.u32 4788187, %v438
    %v440 = vand.u32 2147483647, %v439
    %v442 = vcvt.s32.f32 %v435
    %v443 = vmul.f32 %v442, %v440
    %v444 = vxor.u32 %v443, 2147483648
    %v445 = vsel %vm324, %v444, %v443
    %v446 = vsub.s32 4, %v422
    %v447 = vsel %vm324, %v446, %v422
    %v448 = vsel %vm323, %v318, %v445
    %v449 = vsel %vm323, 0, %v447
    %v450 = vmul.f32 %v448, %v448
    %v451 = vmul.f32 %v450, -0.001358992
    %v452 = vadd.f32 %v451, 0.041655596
    %v453 = vmul.f32 %v450, %v452
    %v454 = vadd.f32 %v453, -0.4999988
    %v455 = vmul.f32 %v450, %v454
    %v456 = vadd.f32 1.0, %v455
    %v457 = vmul.f32 %v448, %v448
    %v458 = vmul.f32 %v457, -0.00019511016
    %v459 = vadd.f32 %v458, 0.008332121
    %v460 = vmul.f32 %v457, %v459
    %v461 = vadd.f32 %v460, -0.16666654
    %v462 = vmul.f32 %v457, %v461
    %v463 = vadd.f32 %v462, 1.0
    %v464 = vmul.f32 %v463, %v448
    %vm465 = vweird.f32 %v318
    %v466 = vand.u32 %v449, 3
    %vm467 = vcmp.lt.s32.totalorder %v466, 2
    %vm468 = vcmp.eq.s32.totalorder %v466, 0
    %v469 = vxor.u32 %v464, 2147483648
    %v470 = vsel %vm468, %v456, %v469
    %vm471 = vcmp.eq.s32.totalorder %v466, 2
    %v472 = vxor.u32 %v456, 2147483648
    %v473 = vsel %vm471, %v472, %v464
    %v474 = vsel %vm467, %v470, %v473
    %v475 = vsel %vm465, nan, %v474
    %v476 = vand.u32 2147483647, %v319
    %vm477 = vcmp.le.f32.partialorder %v476, 0.7853982
    %vm478 = vcmp.lt.s32.totalorder %v319, 0
    %v479 = vand.u32 %v319, 2139095040
    %v480 = vshrl.u32 %v479, 23
    %v481 = vsub.s32 %v480, 127
    %v482 = vand.u32 2147483647, %v319
    %v483 = vand.u32 %v482, 8388607
    %v484 = vor.u32 %v483, 8388608
    %v485 = vsub.s32 0, %v484
    %v486 = vadd.s32 %v481, 1
    %vm487 = vcmp.gt.s32.totalorder %v486, 0
    %v488 = vsel %vm487, %v486, 0
    %v489 = vshrl.u32 %v488, 5
    %v490 = vand.u32 %v488, 31
    %v491 = vsub.s32 32, %v490
    %v492 = vshrl.u32 683565275, %v491
    %v493 = vshll.u32 683565275, %v490
    %v494 = vshrl.u32 2475754826, %v491
    %v495 = vor.u32 %v493, %v494
    %v496 = vshll.u32 2475754826, %v490
    %v497 = vshrl.u32 2131351028, %v491
    %v498 = vor.u32 %v496, %v497
    %v499 = vshll.u32 2131351028, %v490
    %v500 = vshrl.u32 2102212464, %v491
    %v501 = vor.u32 %v499, %v500
    %v502 = vshll.u32 2102212464, %v490
    %v503 = vshrl.u32 920167782, %v491
    %v504 = vor.u32 %v502, %v503
    %v505 = vshll.u32 920167782, %v490
    %v506 = vshrl.u32 1326507024, %v491
    %v507 = vor.u32 %v505, %v506
    %vm508 = vcmp.lt.s32.totalorder %v489, 1
    %vm509 = vcmp.lt.s32.totalorder %v489, 2
    %vm510 = vcmp.lt.s32.totalorder %v489, 3
    %vm511 = vcmp.lt.s32.totalorder %v489, 4
    %v512 = vsel %vm508, %v492, %v495
    %v513 = vsel %vm511, %v501, 2102212464
    %v514 = vsel %vm510, %v498, %v513
    %v515 = vsel %vm509, %v512, %v514
    %v516 = vsel %vm508, %v495, %v498
    %v517 = vsel %vm511, %v504, 920167782
    %v518 = vsel %vm510, %v501, %v517
    %v519 = vsel %vm509, %v516, %v518
    %v520 = vsel %vm508, %v498, %v501
    %v521 = vsel %vm511, %v507, 1326507024
    %v522 = vsel %vm510, %v504, %v521
    %v523 = vsel %vm509, %v520, %v522
    %v524 = vshll.u32 %v484, 8
    %v525 = vand.u32 %v524, 65535
    %v526 = vshrl.u32 %v524, 16
    %v527 = vand.u32 %v523, 65535
    %v528 = vshrl.u32 %v523, 16
    %v529 = vmul.u32 %v525, %v527
    %v530 = vmul.u32 %v525, %v528
    %v531 = vmul.u32 %v526, %v527
    %v532 = vmul.u32 %v526, %v528
    %v533 = vshll.u32 %v530, 16
    %v534 = vshrl.u32 %v530, 16
    %v535 = vshll.u32 %v531, 16
    %v536 = vshrl.u32 %v531, 16
    %vm537 = vc.u32 %v529, %v533
    %v538 = vsel %vm537, 1, 0
    %v539 = vadd.s32 %v529, %v533
    %v540 = vadd.s32 %v532, %v538
    %vm541 = vc.u32 %v539, %v535
    %v542 = vsel %vm541, 1, 0
    %v543 = vadd.s32 %v539, %v535
    %v544 = vadd.s32 %v540, %v542
    %v545 = vadd.s32 %v544, %v534
    %v546 = vadd.s32 %v545, %v536
    %v547 = vand.u32 %v524, 65535
    %v548 = vshrl.u32 %v524, 16
    %v549 = vand.u32 %v519, 65535
    %v550 = vshrl.u32 %v519, 16
    %v551 = vmul.u32 %v547, %v549
    %v552 = vmul.u32 %v547, %v550
    %v553 = vmul.u32 %v548, %v549
    %v554 = vmul.u32 %v548, %v550
    %v555 = vshll.u32 %v552, 16
    %v556 = vshrl.u32 %v552, 16
    %v557 = vshll.u32 %v553, 16
    %v558 = vshrl.u32 %v553, 16
    %vm559 = vc.u32 %v551, %v555
    %v560 = vsel %vm559, 1, 0
    %v561 = vadd.s32 %v551, %v555
    %v562 = vadd.s32 %v554, %v560
    %vm563 = vc.u32 %v561, %v557
    %v564 = vsel %vm563, 1, 0
    %v565 = vadd.s32 %v561, %v557
    %v566 = vadd.s32 %v562, %v564
    %v567 = vadd.s32 %v566, %v556
    %v568 = vadd.s32 %v567, %v558
    %v569 = vmul.u32 %v524, %v515
    %v570 = vadd.s32 %v546, %v565
    %vm571 = vc.u32 %v546, %v565
    %v572 = vadd.s32 %v568, 1
    %v573 = vsel %vm571, %v572, %v568
    %v574 = vadd.s32 %v569, %v573
    %v575 = vadd.s32 %v574, 536870912
    %v576 = vshrl.u32 %v575, 30
    %v577 = vshll.u32 %v576, 30
    %v578 = vsub.s32 %v574, %v577
    %vm579 = vcmp.lt.s32.totalorder %v578, 0
    %v580 = vsub.s32 0, %v578
    %v581 = vsel %vm579, %v580, %v578
    %v582 = vclz %v581
    %v583 = vsub.s32 %v582, 2
    %vm584 = vcmp.gt.s32.totalorder 0, %v583
    %v585 = vsel %vm584, 0, %v583
    %v586 = vsub.s32 32, %v585
    %v587 = vshll.u32 %v578, %v585
    %v588 = vshrl.u32 %v570, %v586
    %v589 = vor.u32 %v587, %v588
    %v590 = vsub.s32 4294967266, %v585
    %v591 = vadd.s32 %v590, 127
    %v592 = vshll.u32 %v591, 23
    %v593 = vor.u32 4788187, %v592
    %v594 = vand.u32 2147483647, %v593
    %v596 = vcvt.s32.f32 %v589
    %v597 = vmul.f32 %v596, %v594
    %v598 = vxor.u32 %v597, 2147483648
    %v599 = vsel %vm478, %v598, %v597
    %v600 = vsub.s32 4, %v576
    %v601 = vsel %vm478, %v600, %v576
    %v602 = vsel %vm477, %v319, %v599
    %v603 = vsel %vm477, 0, %v601
    %v604 = vmul.f32 %v602, %v602
    %v605 = vmul.f32 %v604, -0.001358992
    %v606 = vadd.f32 %v605, 0.041655596
    %v607 = vmul.f32 %v604, %v606
    %v608 = vadd.f32 %v607, -0.4999988
    %v609 = vmul.f32 %v604, %v608
    %v610 = vadd.f32 1.0, %v609
    %v611 = vmul.f32 %v602, %v602
    %v612 = vmul.f32 %v611, -0.00019511016
    %v613 = vadd.f32 %v612, 0.008332121
    %v614 = vmul.f32 %v611, %v613
    %v615 = vadd.f32 %v614, -0.16666654
    %v616 = vmul.f32 %v611, %v615
    %v617 = vadd.f32 %v616, 1.0
    %v618 = vmul.f32 %v617, %v602
    %vm619 = vweird.f32 %v319
    %v620 = vand.u32 %v603, 3
    %vm621 = vcmp.lt.s32.totalorder %v620, 2
    %vm622 = vcmp.eq.s32.totalorder %v620, 0
    %v623 = vxor.u32 %v618, 2147483648
    %v624 = vsel %vm622, %v610, %v623
    %vm625 = vcmp.eq.s32.totalorder %v620, 2
    %v626 = vxor.u32 %v610, 2147483648
    %v627 = vsel %vm625, %v626, %v618
    %v628 = vsel %vm621, %v624, %v627
    %v629 = vsel %vm619, nan, %v628
    %v630 = vand.u32 2147483647, %v320
    %vm631 = vcmp.le.f32.partialorder %v630, 0.7853982
    %vm632 = vcmp.lt.s32.totalorder %v320, 0
    %v633 = vand.u32 %v320, 2139095040
    %v634 = vshrl.u32 %v633, 23
    %v635 = vsub.s32 %v634, 127
    %v636 = vand.u32 2147483647, %v320
    %v637 = vand.u32 %v636, 8388607
    %v638 = vor.u32 %v637, 8388608
    %v639 = vsub.s32 0, %v638
    %v640 = vadd.s32 %v635, 1
    %vm641 = vcmp.gt.s32.totalorder %v640, 0
    %v642 = vsel %vm641, %v640, 0
    %v643 = vshrl.u32 %v642, 5
    %v644 = vand.u32 %v642, 31
    %v645 = vsub.s32 32, %v644
    %v646 = vshrl.u32 683565275, %v645
    %v647 = vshll.u32 683565275, %v644
    %v648 = vshrl.u32 2475754826, %v645
    %v649 = vor.u32 %v647, %v648
    %v650 = vshll.u32 2475754826, %v644
    %v651 = vshrl.u32 2131351028, %v645
    %v652 = vor.u32 %v650, %v651
    %v653 = vshll.u32 2131351028, %v644
    %v654 = vshrl.u32 2102212464, %v645
    %v655 = vor.u32 %v653, %v654
    %v656 = vshll.u32 2102212464, %v644
    %v657 = vshrl.u32 920167782, %v645
    %v658 = vor.u32 %v656, %v657
    %v659 = vshll.u32 920167782, %v644
    %v660 = vshrl.u32 1326507024, %v645
    %v661 = vor.u32 %v659, %v660
    %vm662 = vcmp.lt.s32.totalorder %v643, 1
    %vm663 = vcmp.lt.s32.totalorder %v643, 2
    %vm664 = vcmp.lt.s32.totalorder %v643, 3
    %vm665 = vcmp.lt.s32.totalorder %v643, 4
    %v666 = vsel %vm662, %v646, %v649
    %v667 = vsel %vm665, %v655, 2102212464
    %v668 = vsel %vm664, %v652, %v667
    %v669 = vsel %vm663, %v666, %v668
    %v670 = vsel %vm662, %v649, %v652
    %v671 = vsel %vm665, %v658, 920167782
    %v672 = vsel %vm664, %v655, %v671
    %v673 = vsel %vm663, %v670, %v672
    %v674 = vsel %vm662, %v652, %v655
    %v675 = vsel %vm665, %v661, 1326507024
    %v676 = vsel %vm664, %v658, %v675
    %v677 = vsel %vm663, %v674, %v676
    %v678 = vshll.u32 %v638, 8
    %v679 = vand.u32 %v678, 65535
    %v680 = vshrl.u32 %v678, 16
    %v681 = vand.u32 %v677, 65535
    %v682 = vshrl.u32 %v677, 16
    %v683 = vmul.u32 %v679, %v681
    %v684 = vmul.u32 %v679, %v682
    %v685 = vmul.u32 %v680, %v681
    %v686 = vmul.u32 %v680, %v682
    %v687 = vshll.u32 %v684, 16
    %v688 = vshrl.u32 %v684, 16
    %v689 = vshll.u32 %v685, 16
    %v690 = vshrl.u32 %v685, 16
    %vm691 = vc.u32 %v683, %v687
    %v692 = vsel %vm691, 1, 0
    %v693 = vadd.s32 %v683, %v687
    %v694 = vadd.s32 %v686, %v692
    %vm695 = vc.u32 %v693, %v689
    %v696 = vsel %vm695, 1, 0
    %v697 = vadd.s32 %v693, %v689
    %v698 = vadd.s32 %v694, %v696
    %v699 = vadd.s32 %v698, %v688
    %v700 = vadd.s32 %v699, %v690
    %v701 = vand.u32 %v678, 65535
    %v702 = vshrl.u32 %v678, 16
    %v703 = vand.u32 %v673, 65535
    %v704 = vshrl.u32 %v673, 16
    %v705 = vmul.u32 %v701, %v703
    %v706 = vmul.u32 %v701, %v704
    %v707 = vmul.u32 %v702, %v703
    %v708 = vmul.u32 %v702, %v704
    %v709 = vshll.u32 %v706, 16
    %v710 = vshrl.u32 %v706, 16
    %v711 = vshll.u32 %v707, 16
    %v712 = vshrl.u32 %v707, 16
    %vm713 = vc.u32 %v705, %v709
    %v714 = vsel %vm713, 1, 0
    %v715 = vadd.s32 %v705, %v709
    %v716 = vadd.s32 %v708, %v714
    %vm717 = vc.u32 %v715, %v711
    %v718 = vsel %vm717, 1, 0
    %v719 = vadd.s32 %v715, %v711
    %v720 = vadd.s32 %v716, %v718
    %v721 = vadd.s32 %v720, %v710
    %v722 = vadd.s32 %v721, %v712
    %v723 = vmul.u32 %v678, %v669
    %v724 = vadd.s32 %v700, %v719
    %vm725 = vc.u32 %v700, %v719
    %v726 = vadd.s32 %v722, 1
    %v727 = vsel %vm725, %v726, %v722
    %v728 = vadd.s32 %v723, %v727
    %v729 = vadd.s32 %v728, 536870912
    %v730 = vshrl.u32 %v729, 30
    %v731 = vshll.u32 %v730, 30
    %v732 = vsub.s32 %v728, %v731
    %vm733 = vcmp.lt.s32.totalorder %v732, 0
    %v734 = vsub.s32 0, %v732
    %v735 = vsel %vm733, %v734, %v732
    %v736 = vclz %v735
    %v737 = vsub.s32 %v736, 2
    %vm738 = vcmp.gt.s32.totalorder 0, %v737
    %v739 = vsel %vm738, 0, %v737
    %v740 = vsub.s32 32, %v739
    %v741 = vshll.u32 %v732, %v739
    %v742 = vshrl.u32 %v724, %v740
    %v743 = vor.u32 %v741, %v742
    %v744 = vsub.s32 4294967266, %v739
    %v745 = vadd.s32 %v744, 127
    %v746 = vshll.u32 %v745, 23
    %v747 = vor.u32 4788187, %v746
    %v748 = vand.u32 2147483647, %v747
    %v750 = vcvt.s32.f32 %v743
    %v751 = vmul.f32 %v750, %v748
    %v752 = vxor.u32 %v751, 2147483648
    %v753 = vsel %vm632, %v752, %v751
    %v754 = vsub.s32 4, %v730
    %v755 = vsel %vm632, %v754, %v730
    %v756 = vsel %vm631, %v320, %v753
    %v757 = vsel %vm631, 0, %v755
    %v758 = vmul.f32 %v756, %v756
    %v759 = vmul.f32 %v758, -0.001358992
    %v760 = vadd.f32 %v759, 0.041655596
    %v761 = vmul.f32 %v758, %v760
    %v762 = vadd.f32 %v761, -0.4999988
    %v763 = vmul.f32 %v758, %v762
    %v764 = vadd.f32 1.0, %v763
    %v765 = vmul.f32 %v756, %v756
    %v766 = vmul.f32 %v765, -0.00019511016
    %v767 = vadd.f32 %v766, 0.008332121
    %v768 = vmul.f32 %v765, %v767
    %v769 = vadd.f32 %v768, -0.16666654
    %v770 = vmul.f32 %v765, %v769
    %v771 = vadd.f32 %v770, 1.0
    %v772 = vmul.f32 %v771, %v756
    %vm773 = vweird.f32 %v320
    %v774 = vand.u32 %v757, 3
    %vm775 = vcmp.lt.s32.totalorder %v774, 2
    %vm776 = vcmp.eq.s32.totalorder %v774, 0
    %v777 = vxor.u32 %v772, 2147483648
    %v778 = vsel %vm776, %v764, %v777
    %vm779 = vcmp.eq.s32.totalorder %v774, 2
    %v780 = vxor.u32 %v764, 2147483648
    %v781 = vsel %vm779, %v780, %v772
    %v782 = vsel %vm775, %v778, %v781
    %v783 = vsel %vm773, nan, %v782
    %v784 = vand.u32 2147483647, %v321
    %vm785 = vcmp.le.f32.partialorder %v784, 0.7853982
    %vm786 = vcmp.lt.s32.totalorder %v321, 0
    %v787 = vand.u32 %v321, 2139095040
    %v788 = vshrl.u32 %v787, 23
    %v789 = vsub.s32 %v788, 127
    %v790 = vand.u32 2147483647, %v321
    %v791 = vand.u32 %v790, 8388607
    %v792 = vor.u32 %v791, 8388608
    %v793 = vsub.s32 0, %v792
    %v794 = vadd.s32 %v789, 1
    %vm795 = vcmp.gt.s32.totalorder %v794, 0
    %v796 = vsel %vm795, %v794, 0
    %v797 = vshrl.u32 %v796, 5
    %v798 = vand.u32 %v796, 31
    %v799 = vsub.s32 32, %v798
    %v800 = vshrl.u32 683565275, %v799
    %v801 = vshll.u32 683565275, %v798
    %v802 = vshrl.u32 2475754826, %v799
    %v803 = vor.u32 %v801, %v802
    %v804 = vshll.u32 2475754826, %v798
    %v805 = vshrl.u32 2131351028, %v799
    %v806 = vor.u32 %v804, %v805
    %v807 = vshll.u32 2131351028, %v798
    %v808 = vshrl.u32 2102212464, %v799
    %v809 = vor.u32 %v807, %v808
    %v810 = vshll.u32 2102212464, %v798
    %v811 = vshrl.u32 920167782, %v799
    %v812 = vor.u32 %v810, %v811
    %v813 = vshll.u32 920167782, %v798
    %v814 = vshrl.u32 1326507024, %v799
    %v815 = vor.u32 %v813, %v814
    %vm816 = vcmp.lt.s32.totalorder %v797, 1
    %vm817 = vcmp.lt.s32.totalorder %v797, 2
    %vm818 = vcmp.lt.s32.totalorder %v797, 3
    %vm819 = vcmp.lt.s32.totalorder %v797, 4
    %v820 = vsel %vm816, %v800, %v803
    %v821 = vsel %vm819, %v809, 2102212464
    %v822 = vsel %vm818, %v806, %v821
    %v823 = vsel %vm817, %v820, %v822
    %v824 = vsel %vm816, %v803, %v806
    %v825 = vsel %vm819, %v812, 920167782
    %v826 = vsel %vm818, %v809, %v825
    %v827 = vsel %vm817, %v824, %v826
    %v828 = vsel %vm816, %v806, %v809
    %v829 = vsel %vm819, %v815, 1326507024
    %v830 = vsel %vm818, %v812, %v829
    %v831 = vsel %vm817, %v828, %v830
    %v832 = vshll.u32 %v792, 8
    %v833 = vand.u32 %v832, 65535
    %v834 = vshrl.u32 %v832, 16
    %v835 = vand.u32 %v831, 65535
    %v836 = vshrl.u32 %v831, 16
    %v837 = vmul.u32 %v833, %v835
    %v838 = vmul.u32 %v833, %v836
    %v839 = vmul.u32 %v834, %v835
    %v840 = vmul.u32 %v834, %v836
    %v841 = vshll.u32 %v838, 16
    %v842 = vshrl.u32 %v838, 16
    %v843 = vshll.u32 %v839, 16
    %v844 = vshrl.u32 %v839, 16
    %vm845 = vc.u32 %v837, %v841
    %v846 = vsel %vm845, 1, 0
    %v847 = vadd.s32 %v837, %v841
    %v848 = vadd.s32 %v840, %v846
    %vm849 = vc.u32 %v847, %v843
    %v850 = vsel %vm849, 1, 0
    %v851 = vadd.s32 %v847, %v843
    %v852 = vadd.s32 %v848, %v850
    %v853 = vadd.s32 %v852, %v842
    %v854 = vadd.s32 %v853, %v844
    %v855 = vand.u32 %v832, 65535
    %v856 = vshrl.u32 %v832, 16
    %v857 = vand.u32 %v827, 65535
    %v858 = vshrl.u32 %v827, 16
    %v859 = vmul.u32 %v855, %v857
    %v860 = vmul.u32 %v855, %v858
    %v861 = vmul.u32 %v856, %v857
    %v862 = vmul.u32 %v856, %v858
    %v863 = vshll.u32 %v860, 16
    %v864 = vshrl.u32 %v860, 16
    %v865 = vshll.u32 %v861, 16
    %v866 = vshrl.u32 %v861, 16
    %vm867 = vc.u32 %v859, %v863
    %v868 = vsel %vm867, 1, 0
    %v869 = vadd.s32 %v859, %v863
    %v870 = vadd.s32 %v862, %v868
    %vm871 = vc.u32 %v869, %v865
    %v872 = vsel %vm871, 1, 0
    %v873 = vadd.s32 %v869, %v865
    %v874 = vadd.s32 %v870, %v872
    %v875 = vadd.s32 %v874, %v864
    %v876 = vadd.s32 %v875, %v866
    %v877 = vmul.u32 %v832, %v823
    %v878 = vadd.s32 %v854, %v873
    %vm879 = vc.u32 %v854, %v873
    %v880 = vadd.s32 %v876, 1
    %v881 = vsel %vm879, %v880, %v876
    %v882 = vadd.s32 %v877, %v881
    %v883 = vadd.s32 %v882, 536870912
    %v884 = vshrl.u32 %v883, 30
    %v885 = vshll.u32 %v884, 30
    %v886 = vsub.s32 %v882, %v885
    %vm887 = vcmp.lt.s32.totalorder %v886, 0
    %v888 = vsub.s32 0, %v886
    %v889 = vsel %vm887, %v888, %v886
    %v890 = vclz %v889
    %v891 = vsub.s32 %v890, 2
    %vm892 = vcmp.gt.s32.totalorder 0, %v891
    %v893 = vsel %vm892, 0, %v891
    %v894 = vsub.s32 32, %v893
    %v895 = vshll.u32 %v886, %v893
    %v896 = vshrl.u32 %v878, %v894
    %v897 = vor.u32 %v895, %v896
    %v898 = vsub.s32 4294967266, %v893
    %v899 = vadd.s32 %v898, 127
    %v900 = vshll.u32 %v899, 23
    %v901 = vor.u32 4788187, %v900
    %v902 = vand.u32 2147483647, %v901
    %v904 = vcvt.s32.f32 %v897
    %v905 = vmul.f32 %v904, %v902
    %v906 = vxor.u32 %v905, 2147483648
    %v907 = vsel %vm786, %v906, %v905
    %v908 = vsub.s32 4, %v884
    %v909 = vsel %vm786, %v908, %v884
    %v910 = vsel %vm785, %v321, %v907
    %v911 = vsel %vm785, 0, %v909
    %v912 = vmul.f32 %v910, %v910
    %v913 = vmul.f32 %v912, -0.001358992
    %v914 = vadd.f32 %v913, 0.041655596
    %v915 = vmul.f32 %v912, %v914
    %v916 = vadd.f32 %v915, -0.4999988
    %v917 = vmul.f32 %v912, %v916
    %v918 = vadd.f32 1.0, %v917
    %v919 = vmul.f32 %v910, %v910
    %v920 = vmul.f32 %v919, -0.00019511016
    %v921 = vadd.f32 %v920, 0.008332121
    %v922 = vmul.f32 %v919, %v921
    %v923 = vadd.f32 %v922, -0.16666654
    %v924 = vmul.f32 %v919, %v923
    %v925 = vadd.f32 %v924, 1.0
    %v926 = vmul.f32 %v925, %v910
    %vm927 = vweird.f32 %v321
    %v928 = vand.u32 %v911, 3
    %vm929 = vcmp.lt.s32.totalorder %v928, 2
    %vm930 = vcmp.eq.s32.totalorder %v928, 0
    %v931 = vxor.u32 %v926, 2147483648
    %v932 = vsel %vm930, %v918, %v931
    %vm933 = vcmp.eq.s32.totalorder %v928, 2
    %v934 = vxor.u32 %v918, 2147483648
    %v935 = vsel %vm933, %v934, %v926
    %v936 = vsel %vm929, %v932, %v935
    %v937 = vsel %vm927, nan, %v936
    %v938 = vmul.f32 %v281, %v475
    %v939 = vmul.f32 %v293, %v629
    %v940 = vmul.f32 %v305, %v783
    %v941 = vmul.f32 %v317, %v937
    %v942 = vand.u32 2147483647, %v318
    %vm943 = vcmp.le.f32.partialorder %v942, 0.7853982
    %vm944 = vcmp.lt.s32.totalorder %v318, 0
    %v945 = vand.u32 %v318, 2139095040
    %v946 = vshrl.u32 %v945, 23
    %v947 = vsub.s32 %v946, 127
    %v948 = vand.u32 2147483647, %v318
    %v949 = vand.u32 %v948, 8388607
    %v950 = vor.u32 %v949, 8388608
    %v951 = vsub.s32 0, %v950
    %v952 = vadd.s32 %v947, 1
    %vm953 = vcmp.gt.s32.totalorder %v952, 0
    %v954 = vsel %vm953, %v952, 0
    %v955 = vshrl.u32 %v954, 5
    %v956 = vand.u32 %v954, 31
    %v957 = vsub.s32 32, %v956
    %v958 = vshrl.u32 683565275, %v957
    %v959 = vshll.u32 683565275, %v956
    %v960 = vshrl.u32 2475754826, %v957
    %v961 = vor.u32 %v959, %v960
    %v962 = vshll.u32 2475754826, %v956
    %v963 = vshrl.u32 2131351028, %v957
    %v964 = vor.u32 %v962, %v963
    %v965 = vshll.u32 2131351028, %v956
    %v966 = vshrl.u32 2102212464, %v957
    %v967 = vor.u32 %v965, %v966
    %v968 = vshll.u32 2102212464, %v956
    %v969 = vshrl.u32 920167782, %v957
    %v970 = vor.u32 %v968, %v969
    %v971 = vshll.u32 920167782, %v956
    %v972 = vshrl.u32 1326507024, %v957
    %v973 = vor.u32 %v971, %v972
    %vm974 = vcmp.lt.s32.totalorder %v955, 1
    %vm975 = vcmp.lt.s32.totalorder %v955, 2
    %vm976 = vcmp.lt.s32.totalorder %v955, 3
    %vm977 = vcmp.lt.s32.totalorder %v955, 4
    %v978 = vsel %vm974, %v958, %v961
    %v979 = vsel %vm977, %v967, 2102212464
    %v980 = vsel %vm976, %v964, %v979
    %v981 = vsel %vm975, %v978, %v980
    %v982 = vsel %vm974, %v961, %v964
    %v983 = vsel %vm977, %v970, 920167782
    %v984 = vsel %vm976, %v967, %v983
    %v985 = vsel %vm975, %v982, %v984
    %v986 = vsel %vm974, %v964, %v967
    %v987 = vsel %vm977, %v973, 1326507024
    %v988 = vsel %vm976, %v970, %v987
    %v989 = vsel %vm975, %v986, %v988
    %v990 = vshll.u32 %v950, 8
    %v991 = vand.u32 %v990, 65535
    %v992 = vshrl.u32 %v990, 16
    %v993 = vand.u32 %v989, 65535
    %v994 = vshrl.u32 %v989, 16
    %v995 = vmul.u32 %v991, %v993
    %v996 = vmul.u32 %v991, %v994
    %v997 = vmul.u32 %v992, %v993
    %v998 = vmul.u32 %v992, %v994
    %v999 = vshll.u32 %v996, 16
    %v1000 = vshrl.u32 %v996, 16
    %v1001 = vshll.u32 %v997, 16
    %v1002 = vshrl.u32 %v997, 16
    %vm1003 = vc.u32 %v995, %v999
    %v1004 = vsel %vm1003, 1, 0
    %v1005 = vadd.s32 %v995, %v999
    %v1006 = vadd.s32 %v998, %v1004
    %vm1007 = vc.u32 %v1005, %v1001
    %v1008 = vsel %vm1007, 1, 0
    %v1009 = vadd.s32 %v1005, %v1001
    %v1010 = vadd.s32 %v1006, %v1008
    %v1011 = vadd.s32 %v1010, %v1000
    %v1012 = vadd.s32 %v1011, %v1002
    %v1013 = vand.u32 %v990, 65535
    %v1014 = vshrl.u32 %v990, 16
    %v1015 = vand.u32 %v985, 65535
    %v1016 = vshrl.u32 %v985, 16
    %v1017 = vmul.u32 %v1013, %v1015
    %v1018 = vmul.u32 %v1013, %v1016
    %v1019 = vmul.u32 %v1014, %v1015
    %v1020 = vmul.u32 %v1014, %v1016
    %v1021 = vshll.u32 %v1018, 16
    %v1022 = vshrl.u32 %v1018, 16
    %v1023 = vshll.u32 %v1019, 16
    %v1024 = vshrl.u32 %v1019, 16
    %vm1025 = vc.u32 %v1017, %v1021
    %v1026 = vsel %vm1025, 1, 0
    %v1027 = vadd.s32 %v1017, %v1021
    %v1028 = vadd.s32 %v1020, %v1026
    %vm1029 = vc.u32 %v1027, %v1023
    %v1030 = vsel %vm1029, 1, 0
    %v1031 = vadd.s32 %v1027, %v1023
    %v1032 = vadd.s32 %v1028, %v1030
    %v1033 = vadd.s32 %v1032, %v1022
    %v1034 = vadd.s32 %v1033, %v1024
    %v1035 = vmul.u32 %v990, %v981
    %v1036 = vadd.s32 %v1012, %v1031
    %vm1037 = vc.u32 %v1012, %v1031
    %v1038 = vadd.s32 %v1034, 1
    %v1039 = vsel %vm1037, %v1038, %v1034
    %v1040 = vadd.s32 %v1035, %v1039
    %v1041 = vadd.s32 %v1040, 536870912
    %v1042 = vshrl.u32 %v1041, 30
    %v1043 = vshll.u32 %v1042, 30
    %v1044 = vsub.s32 %v1040, %v1043
    %vm1045 = vcmp.lt.s32.totalorder %v1044, 0
    %v1046 = vsub.s32 0, %v1044
    %v1047 = vsel %vm1045, %v1046, %v1044
    %v1048 = vclz %v1047
    %v1049 = vsub.s32 %v1048, 2
    %vm1050 = vcmp.gt.s32.totalorder 0, %v1049
    %v1051 = vsel %vm1050, 0, %v1049
    %v1052 = vsub.s32 32, %v1051
    %v1053 = vshll.u32 %v1044, %v1051
    %v1054 = vshrl.u32 %v1036, %v1052
    %v1055 = vor.u32 %v1053, %v1054
    %v1056 = vsub.s32 4294967266, %v1051
    %v1057 = vadd.s32 %v1056, 127
    %v1058 = vshll.u32 %v1057, 23
    %v1059 = vor.u32 4788187, %v1058
    %v1060 = vand.u32 2147483647, %v1059
    %v1062 = vcvt.s32.f32 %v1055
    %v1063 = vmul.f32 %v1062, %v1060
    %v1064 = vxor.u32 %v1063, 2147483648
    %v1065 = vsel %vm944, %v1064, %v1063
    %v1066 = vsub.s32 4, %v1042
    %v1067 = vsel %vm944, %v1066, %v1042
    %v1068 = vsel %vm943, %v318, %v1065
    %v1069 = vsel %vm943, 0, %v1067
    %v1070 = vmul.f32 %v1068, %v1068
    %v1071 = vmul.f32 %v1070, -0.001358992
    %v1072 = vadd.f32 %v1071, 0.041655596
    %v1073 = vmul.f32 %v1070, %v1072
    %v1074 = vadd.f32 %v1073, -0.4999988
    %v1075 = vmul.f32 %v1070, %v1074
    %v1076 = vadd.f32 1.0, %v1075
    %v1077 = vmul.f32 %v1068, %v1068
    %v1078 = vmul.f32 %v1077, -0.00019511016
    %v1079 = vadd.f32 %v1078, 0.008332121
    %v1080 = vmul.f32 %v1077, %v1079
    %v1081 = vadd.f32 %v1080, -0.16666654
    %v1082 = vmul.f32 %v1077, %v1081
    %v1083 = vadd.f32 %v1082, 1.0
    %v1084 = vmul.f32 %v1083, %v1068
    %vm1085 = vweird.f32 %v318
    %v1086 = vadd.s32 %v1069, 3
    %v1087 = vand.u32 %v1086, 3
    %vm1088 = vcmp.lt.s32.totalorder %v1087, 2
    %vm1089 = vcmp.eq.s32.totalorder %v1087, 0
    %v1090 = vxor.u32 %v1084, 2147483648
    %v1091 = vsel %vm1089, %v1076, %v1090
    %vm1092 = vcmp.eq.s32.totalorder %v1087, 2
    %v1093 = vxor.u32 %v1076, 2147483648
    %v1094 = vsel %vm1092, %v1093, %v1084
    %v1095 = vsel %vm1088, %v1091, %v1094
    %v1096 = vsel %vm1085, nan, %v1095
    %v1097 = vand.u32 2147483647, %v319
    %vm1098 = vcmp.le.f32.partialorder %v1097, 0.7853982
    %vm1099 = vcmp.lt.s32.totalorder %v319, 0
    %v1100 = vand.u32 %v319, 2139095040
    %v1101 = vshrl.u32 %v1100, 23
    %v1102 = vsub.s32 %v1101, 127
    %v1103 = vand.u32 2147483647, %v319
    %v1104 = vand.u32 %v1103, 8388607
    %v1105 = vor.u32 %v1104, 8388608
    %v1106 = vsub.s32 0, %v1105
    %v1107 = vadd.s32 %v1102, 1
    %vm1108 = vcmp.gt.s32.totalorder %v1107, 0
    %v1109 = vsel %vm1108, %v1107, 0
    %v1110 = vshrl.u32 %v1109, 5
    %v1111 = vand.u32 %v1109, 31
    %v1112 = vsub.s32 32, %v1111
    %v1113 = vshrl.u32 683565275, %v1112
    %v1114 = vshll.u32 683565275, %v1111
    %v1115 = vshrl.u32 2475754826, %v1112
    %v1116 = vor.u32 %v1114, %v1115
    %v1117 = vshll.u32 2475754826, %v1111
    %v1118 = vshrl.u32 2131351028, %v1112
    %v1119 = vor.u32 %v1117, %v1118
    %v1120 = vshll.u32 2131351028, %v1111
    %v1121 = vshrl.u32 2102212464, %v1112
    %v1122 = vor.u32 %v1120, %v1121
    %v1123 = vshll.u32 2102212464, %v1111
    %v1124 = vshrl.u32 920167782, %v1112
    %v1125 = vor.u32 %v1123, %v1124
    %v1126 = vshll.u32 920167782, %v1111
    %v1127 = vshrl.u32 1326507024, %v1112
    %v1128 = vor.u32 %v1126, %v1127
    %vm1129 = vcmp.lt.s32.totalorder %v1110, 1
    %vm1130 = vcmp.lt.s32.totalorder %v1110, 2
    %vm1131 = vcmp.lt.s32.totalorder %v1110, 3
    %vm1132 = vcmp.lt.s32.totalorder %v1110, 4
    %v1133 = vsel %vm1129, %v1113, %v1116
    %v1134 = vsel %vm1132, %v1122, 2102212464
    %v1135 = vsel %vm1131, %v1119, %v1134
    %v1136 = vsel %vm1130, %v1133, %v1135
    %v1137 = vsel %vm1129, %v1116, %v1119
    %v1138 = vsel %vm1132, %v1125, 920167782
    %v1139 = vsel %vm1131, %v1122, %v1138
    %v1140 = vsel %vm1130, %v1137, %v1139
    %v1141 = vsel %vm1129, %v1119, %v1122
    %v1142 = vsel %vm1132, %v1128, 1326507024
    %v1143 = vsel %vm1131, %v1125, %v1142
    %v1144 = vsel %vm1130, %v1141, %v1143
    %v1145 = vshll.u32 %v1105, 8
    %v1146 = vand.u32 %v1145, 65535
    %v1147 = vshrl.u32 %v1145, 16
    %v1148 = vand.u32 %v1144, 65535
    %v1149 = vshrl.u32 %v1144, 16
    %v1150 = vmul.u32 %v1146, %v1148
    %v1151 = vmul.u32 %v1146, %v1149
    %v1152 = vmul.u32 %v1147, %v1148
    %v1153 = vmul.u32 %v1147, %v1149
    %v1154 = vshll.u32 %v1151, 16
    %v1155 = vshrl.u32 %v1151, 16
    %v1156 = vshll.u32 %v1152, 16
    %v1157 = vshrl.u32 %v1152, 16
    %vm1158 = vc.u32 %v1150, %v1154
    %v1159 = vsel %vm1158, 1, 0
    %v1160 = vadd.s32 %v1150, %v1154
    %v1161 = vadd.s32 %v1153, %v1159
    %vm1162 = vc.u32 %v1160, %v1156
    %v1163 = vsel %vm1162, 1, 0
    %v1164 = vadd.s32 %v1160, %v1156
    %v1165 = vadd.s32 %v1161, %v1163
    %v1166 = vadd.s32 %v1165, %v1155
    %v1167 = vadd.s32 %v1166, %v1157
    %v1168 = vand.u32 %v1145, 65535
    %v1169 = vshrl.u32 %v1145, 16
    %v1170 = vand.u32 %v1140, 65535
    %v1171 = vshrl.u32 %v1140, 16
    %v1172 = vmul.u32 %v1168, %v1170
    %v1173 = vmul.u32 %v1168, %v1171
    %v1174 = vmul.u32 %v1169, %v1170
    %v1175 = vmul.u32 %v1169, %v1171
    %v1176 = vshll.u32 %v1173, 16
    %v1177 = vshrl.u32 %v1173, 16
    %v1178 = vshll.u32 %v1174, 16
    %v1179 = vshrl.u32 %v1174, 16
    %vm1180 = vc.u32 %v1172, %v1176
    %v1181 = vsel %vm1180, 1, 0
    %v1182 = vadd.s32 %v1172, %v1176
    %v1183 = vadd.s32 %v1175, %v1181
    %vm1184 = vc.u32 %v1182, %v1178
    %v1185 = vsel %vm1184, 1, 0
    %v1186 = vadd.s32 %v1182, %v1178
    %v1187 = vadd.s32 %v1183, %v1185
    %v1188 = vadd.s32 %v1187, %v1177
    %v1189 = vadd.s32 %v1188, %v1179
    %v1190 = vmul.u32 %v1145, %v1136
    %v1191 = vadd.s32 %v1167, %v1186
    %vm1192 = vc.u32 %v1167, %v1186
    %v1193 = vadd.s32 %v1189, 1
    %v1194 = vsel %vm1192, %v1193, %v1189
    %v1195 = vadd.s32 %v1190, %v1194
    %v1196 = vadd.s32 %v1195, 536870912
    %v1197 = vshrl.u32 %v1196, 30
    %v1198 = vshll.u32 %v1197, 30
    %v1199 = vsub.s32 %v1195, %v1198
    %vm1200 = vcmp.lt.s32.totalorder %v1199, 0
    %v1201 = vsub.s32 0, %v1199
    %v1202 = vsel %vm1200, %v1201, %v1199
    %v1203 = vclz %v1202
    %v1204 = vsub.s32 %v1203, 2
    %vm1205 = vcmp.gt.s32.totalorder 0, %v1204
    %v1206 = vsel %vm1205, 0, %v1204
    %v1207 = vsub.s32 32, %v1206
    %v1208 = vshll.u32 %v1199, %v1206
    %v1209 = vshrl.u32 %v1191, %v1207
    %v1210 = vor.u32 %v1208, %v1209
    %v1211 = vsub.s32 4294967266, %v1206
    %v1212 = vadd.s32 %v1211, 127
    %v1213 = vshll.u32 %v1212, 23
    %v1214 = vor.u32 4788187, %v1213
    %v1215 = vand.u32 2147483647, %v1214
    %v1217 = vcvt.s32.f32 %v1210
    %v1218 = vmul.f32 %v1217, %v1215
    %v1219 = vxor.u32 %v1218, 2147483648
    %v1220 = vsel %vm1099, %v1219, %v1218
    %v1221 = vsub.s32 4, %v1197
    %v1222 = vsel %vm1099, %v1221, %v1197
    %v1223 = vsel %vm1098, %v319, %v1220
    %v1224 = vsel %vm1098, 0, %v1222
    %v1225 = vmul.f32 %v1223, %v1223
    %v1226 = vmul.f32 %v1225, -0.001358992
    %v1227 = vadd.f32 %v1226, 0.041655596
    %v1228 = vmul.f32 %v1225, %v1227
    %v1229 = vadd.f32 %v1228, -0.4999988
    %v1230 = vmul.f32 %v1225, %v1229
    %v1231 = vadd.f32 1.0, %v1230
    %v1232 = vmul.f32 %v1223, %v1223
    %v1233 = vmul.f32 %v1232, -0.00019511016
    %v1234 = vadd.f32 %v1233, 0.008332121
    %v1235 = vmul.f32 %v1232, %v1234
    %v1236 = vadd.f32 %v1235, -0.16666654
    %v1237 = vmul.f32 %v1232, %v1236
    %v1238 = vadd.f32 %v1237, 1.0
    %v1239 = vmul.f32 %v1238, %v1223
    %vm1240 = vweird.f32 %v319
    %v1241 = vadd.s32 %v1224, 3
    %v1242 = vand.u32 %v1241, 3
    %vm1243 = vcmp.lt.s32.totalorder %v1242, 2
    %vm1244 = vcmp.eq.s32.totalorder %v1242, 0
    %v1245 = vxor.u32 %v1239, 2147483648
    %v1246 = vsel %vm1244, %v1231, %v1245
    %vm1247 = vcmp.eq.s32.totalorder %v1242, 2
    %v1248 = vxor.u32 %v1231, 2147483648
    %v1249 = vsel %vm1247, %v1248, %v1239
    %v1250 = vsel %vm1243, %v1246, %v1249
    %v1251 = vsel %vm1240, nan, %v1250
    %v1252 = vand.u32 2147483647, %v320
    %vm1253 = vcmp.le.f32.partialorder %v1252, 0.7853982
    %vm1254 = vcmp.lt.s32.totalorder %v320, 0
    %v1255 = vand.u32 %v320, 2139095040
    %v1256 = vshrl.u32 %v1255, 23
    %v1257 = vsub.s32 %v1256, 127
    %v1258 = vand.u32 2147483647, %v320
    %v1259 = vand.u32 %v1258, 8388607
    %v1260 = vor.u32 %v1259, 8388608
    %v1261 = vsub.s32 0, %v1260
    %v1262 = vadd.s32 %v1257, 1
    %vm1263 = vcmp.gt.s32.totalorder %v1262, 0
    %v1264 = vsel %vm1263, %v1262, 0
    %v1265 = vshrl.u32 %v1264, 5
    %v1266 = vand.u32 %v1264, 31
    %v1267 = vsub.s32 32, %v1266
    %v1268 = vshrl.u32 683565275, %v1267
    %v1269 = vshll.u32 683565275, %v1266
    %v1270 = vshrl.u32 2475754826, %v1267
    %v1271 = vor.u32 %v1269, %v1270
    %v1272 = vshll.u32 2475754826, %v1266
    %v1273 = vshrl.u32 2131351028, %v1267
    %v1274 = vor.u32 %v1272, %v1273
    %v1275 = vshll.u32 2131351028, %v1266
    %v1276 = vshrl.u32 2102212464, %v1267
    %v1277 = vor.u32 %v1275, %v1276
    %v1278 = vshll.u32 2102212464, %v1266
    %v1279 = vshrl.u32 920167782, %v1267
    %v1280 = vor.u32 %v1278, %v1279
    %v1281 = vshll.u32 920167782, %v1266
    %v1282 = vshrl.u32 1326507024, %v1267
    %v1283 = vor.u32 %v1281, %v1282
    %vm1284 = vcmp.lt.s32.totalorder %v1265, 1
    %vm1285 = vcmp.lt.s32.totalorder %v1265, 2
    %vm1286 = vcmp.lt.s32.totalorder %v1265, 3
    %vm1287 = vcmp.lt.s32.totalorder %v1265, 4
    %v1288 = vsel %vm1284, %v1268, %v1271
    %v1289 = vsel %vm1287, %v1277, 2102212464
    %v1290 = vsel %vm1286, %v1274, %v1289
    %v1291 = vsel %vm1285, %v1288, %v1290
    %v1292 = vsel %vm1284, %v1271, %v1274
    %v1293 = vsel %vm1287, %v1280, 920167782
    %v1294 = vsel %vm1286, %v1277, %v1293
    %v1295 = vsel %vm1285, %v1292, %v1294
    %v1296 = vsel %vm1284, %v1274, %v1277
    %v1297 = vsel %vm1287, %v1283, 1326507024
    %v1298 = vsel %vm1286, %v1280, %v1297
    %v1299 = vsel %vm1285, %v1296, %v1298
    %v1300 = vshll.u32 %v1260, 8
    %v1301 = vand.u32 %v1300, 65535
    %v1302 = vshrl.u32 %v1300, 16
    %v1303 = vand.u32 %v1299, 65535
    %v1304 = vshrl.u32 %v1299, 16
    %v1305 = vmul.u32 %v1301, %v1303
    %v1306 = vmul.u32 %v1301, %v1304
    %v1307 = vmul.u32 %v1302, %v1303
    %v1308 = vmul.u32 %v1302, %v1304
    %v1309 = vshll.u32 %v1306, 16
    %v1310 = vshrl.u32 %v1306, 16
    %v1311 = vshll.u32 %v1307, 16
    %v1312 = vshrl.u32 %v1307, 16
    %vm1313 = vc.u32 %v1305, %v1309
    %v1314 = vsel %vm1313, 1, 0
    %v1315 = vadd.s32 %v1305, %v1309
    %v1316 = vadd.s32 %v1308, %v1314
    %vm1317 = vc.u32 %v1315, %v1311
    %v1318 = vsel %vm1317, 1, 0
    %v1319 = vadd.s32 %v1315, %v1311
    %v1320 = vadd.s32 %v1316, %v1318
    %v1321 = vadd.s32 %v1320, %v1310
    %v1322 = vadd.s32 %v1321, %v1312
    %v1323 = vand.u32 %v1300, 65535
    %v1324 = vshrl.u32 %v1300, 16
    %v1325 = vand.u32 %v1295, 65535
    %v1326 = vshrl.u32 %v1295, 16
    %v1327 = vmul.u32 %v1323, %v1325
    %v1328 = vmul.u32 %v1323, %v1326
    %v1329 = vmul.u32 %v1324, %v1325
    %v1330 = vmul.u32 %v1324, %v1326
    %v1331 = vshll.u32 %v1328, 16
    %v1332 = vshrl.u32 %v1328, 16
    %v1333 = vshll.u32 %v1329, 16
    %v1334 = vshrl.u32 %v1329, 16
    %vm1335 = vc.u32 %v1327, %v1331
    %v1336 = vsel %vm1335, 1, 0
    %v1337 = vadd.s32 %v1327, %v1331
    %v1338 = vadd.s32 %v1330, %v1336
    %vm1339 = vc.u32 %v1337, %v1333
    %v1340 = vsel %vm1339, 1, 0
    %v1341 = vadd.s32 %v1337, %v1333
    %v1342 = vadd.s32 %v1338, %v1340
    %v1343 = vadd.s32 %v1342, %v1332
    %v1344 = vadd.s32 %v1343, %v1334
    %v1345 = vmul.u32 %v1300, %v1291
    %v1346 = vadd.s32 %v1322, %v1341
    %vm1347 = vc.u32 %v1322, %v1341
    %v1348 = vadd.s32 %v1344, 1
    %v1349 = vsel %vm1347, %v1348, %v1344
    %v1350 = vadd.s32 %v1345, %v1349
    %v1351 = vadd.s32 %v1350, 536870912
    %v1352 = vshrl.u32 %v1351, 30
    %v1353 = vshll.u32 %v1352, 30
    %v1354 = vsub.s32 %v1350, %v1353
    %vm1355 = vcmp.lt.s32.totalorder %v1354, 0
    %v1356 = vsub.s32 0, %v1354
    %v1357 = vsel %vm1355, %v1356, %v1354
    %v1358 = vclz %v1357
    %v1359 = vsub.s32 %v1358, 2
    %vm1360 = vcmp.gt.s32.totalorder 0, %v1359
    %v1361 = vsel %vm1360, 0, %v1359
    %v1362 = vsub.s32 32, %v1361
    %v1363 = vshll.u32 %v1354, %v1361
    %v1364 = vshrl.u32 %v1346, %v1362
    %v1365 = vor.u32 %v1363, %v1364
    %v1366 = vsub.s32 4294967266, %v1361
    %v1367 = vadd.s32 %v1366, 127
    %v1368 = vshll.u32 %v1367, 23
    %v1369 = vor.u32 4788187, %v1368
    %v1370 = vand.u32 2147483647, %v1369
    %v1372 = vcvt.s32.f32 %v1365
    %v1373 = vmul.f32 %v1372, %v1370
    %v1374 = vxor.u32 %v1373, 2147483648
    %v1375 = vsel %vm1254, %v1374, %v1373
    %v1376 = vsub.s32 4, %v1352
    %v1377 = vsel %vm1254, %v1376, %v1352
    %v1378 = vsel %vm1253, %v320, %v1375
    %v1379 = vsel %vm1253, 0, %v1377
    %v1380 = vmul.f32 %v1378, %v1378
    %v1381 = vmul.f32 %v1380, -0.001358992
    %v1382 = vadd.f32 %v1381, 0.041655596
    %v1383 = vmul.f32 %v1380, %v1382
    %v1384 = vadd.f32 %v1383, -0.4999988
    %v1385 = vmul.f32 %v1380, %v1384
    %v1386 = vadd.f32 1.0, %v1385
    %v1387 = vmul.f32 %v1378, %v1378
    %v1388 = vmul.f32 %v1387, -0.00019511016
    %v1389 = vadd.f32 %v1388, 0.008332121
    %v1390 = vmul.f32 %v1387, %v1389
    %v1391 = vadd.f32 %v1390, -0.16666654
    %v1392 = vmul.f32 %v1387, %v1391
    %v1393 = vadd.f32 %v1392, 1.0
    %v1394 = vmul.f32 %v1393, %v1378
    %vm1395 = vweird.f32 %v320
    %v1396 = vadd.s32 %v1379, 3
    %v1397 = vand.u32 %v1396, 3
    %vm1398 = vcmp.lt.s32.totalorder %v1397, 2
    %vm1399 = vcmp.eq.s32.totalorder %v1397, 0
    %v1400 = vxor.u32 %v1394, 2147483648
    %v1401 = vsel %vm1399, %v1386, %v1400
    %vm1402 = vcmp.eq.s32.totalorder %v1397, 2
    %v1403 = vxor.u32 %v1386, 2147483648
    %v1404 = vsel %vm1402, %v1403, %v1394
    %v1405 = vsel %vm1398, %v1401, %v1404
    %v1406 = vsel %vm1395, nan, %v1405
    %v1407 = vand.u32 2147483647, %v321
    %vm1408 = vcmp.le.f32.partialorder %v1407, 0.7853982
    %vm1409 = vcmp.lt.s32.totalorder %v321, 0
    %v1410 = vand.u32 %v321, 2139095040
    %v1411 = vshrl.u32 %v1410, 23
    %v1412 = vsub.s32 %v1411, 127
    %v1413 = vand.u32 2147483647, %v321
    %v1414 = vand.u32 %v1413, 8388607
    %v1415 = vor.u32 %v1414, 8388608
    %v1416 = vsub.s32 0, %v1415
    %v1417 = vadd.s32 %v1412, 1
    %vm1418 = vcmp.gt.s32.totalorder %v1417, 0
    %v1419 = vsel %vm1418, %v1417, 0
    %v1420 = vshrl.u32 %v1419, 5
    %v1421 = vand.u32 %v1419, 31
    %v1422 = vsub.s32 32, %v1421
    %v1423 = vshrl.u32 683565275, %v1422
    %v1424 = vshll.u32 683565275, %v1421
    %v1425 = vshrl.u32 2475754826, %v1422
    %v1426 = vor.u32 %v1424, %v1425
    %v1427 = vshll.u32 2475754826, %v1421
    %v1428 = vshrl.u32 2131351028, %v1422
    %v1429 = vor.u32 %v1427, %v1428
    %v1430 = vshll.u32 2131351028, %v1421
    %v1431 = vshrl.u32 2102212464, %v1422
    %v1432 = vor.u32 %v1430, %v1431
    %v1433 = vshll.u32 2102212464, %v1421
    %v1434 = vshrl.u32 920167782, %v1422
    %v1435 = vor.u32 %v1433, %v1434
    %v1436 = vshll.u32 920167782, %v1421
    %v1437 = vshrl.u32 1326507024, %v1422
    %v1438 = vor.u32 %v1436, %v1437
    %vm1439 = vcmp.lt.s32.totalorder %v1420, 1
    %vm1440 = vcmp.lt.s32.totalorder %v1420, 2
    %vm1441 = vcmp.lt.s32.totalorder %v1420, 3
    %vm1442 = vcmp.lt.s32.totalorder %v1420, 4
    %v1443 = vsel %vm1439, %v1423, %v1426
    %v1444 = vsel %vm1442, %v1432, 2102212464
    %v1445 = vsel %vm1441, %v1429, %v1444
    %v1446 = vsel %vm1440, %v1443, %v1445
    %v1447 = vsel %vm1439, %v1426, %v1429
    %v1448 = vsel %vm1442, %v1435, 920167782
    %v1449 = vsel %vm1441, %v1432, %v1448
    %v1450 = vsel %vm1440, %v1447, %v1449
    %v1451 = vsel %vm1439, %v1429, %v1432
    %v1452 = vsel %vm1442, %v1438, 1326507024
    %v1453 = vsel %vm1441, %v1435, %v1452
    %v1454 = vsel %vm1440, %v1451, %v1453
    %v1455 = vshll.u32 %v1415, 8
    %v1456 = vand.u32 %v1455, 65535
    %v1457 = vshrl.u32 %v1455, 16
    %v1458 = vand.u32 %v1454, 65535
    %v1459 = vshrl.u32 %v1454, 16
    %v1460 = vmul.u32 %v1456, %v1458
    %v1461 = vmul.u32 %v1456, %v1459
    %v1462 = vmul.u32 %v1457, %v1458
    %v1463 = vmul.u32 %v1457, %v1459
    %v1464 = vshll.u32 %v1461, 16
    %v1465 = vshrl.u32 %v1461, 16
    %v1466 = vshll.u32 %v1462, 16
    %v1467 = vshrl.u32 %v1462, 16
    %vm1468 = vc.u32 %v1460, %v1464
    %v1469 = vsel %vm1468, 1, 0
    %v1470 = vadd.s32 %v1460, %v1464
    %v1471 = vadd.s32 %v1463, %v1469
    %vm1472 = vc.u32 %v1470, %v1466
    %v1473 = vsel %vm1472, 1, 0
    %v1474 = vadd.s32 %v1470, %v1466
    %v1475 = vadd.s32 %v1471, %v1473
    %v1476 = vadd.s32 %v1475, %v1465
    %v1477 = vadd.s32 %v1476, %v1467
    %v1478 = vand.u32 %v1455, 65535
    %v1479 = vshrl.u32 %v1455, 16
    %v1480 = vand.u32 %v1450, 65535
    %v1481 = vshrl.u32 %v1450, 16
    %v1482 = vmul.u32 %v1478, %v1480
    %v1483 = vmul.u32 %v1478, %v1481
    %v1484 = vmul.u32 %v1479, %v1480
    %v1485 = vmul.u32 %v1479, %v1481
    %v1486 = vshll.u32 %v1483, 16
    %v1487 = vshrl.u32 %v1483, 16
    %v1488 = vshll.u32 %v1484, 16
    %v1489 = vshrl.u32 %v1484, 16
    %vm1490 = vc.u32 %v1482, %v1486
    %v1491 = vsel %vm1490, 1, 0
    %v1492 = vadd.s32 %v1482, %v1486
    %v1493 = vadd.s32 %v1485, %v1491
    %vm1494 = vc.u32 %v1492, %v1488
    %v1495 = vsel %vm1494, 1, 0
    %v1496 = vadd.s32 %v1492, %v1488
    %v1497 = vadd.s32 %v1493, %v1495
    %v1498 = vadd.s32 %v1497, %v1487
    %v1499 = vadd.s32 %v1498, %v1489
    %v1500 = vmul.u32 %v1455, %v1446
    %v1501 = vadd.s32 %v1477, %v1496
    %vm1502 = vc.u32 %v1477, %v1496
    %v1503 = vadd.s32 %v1499, 1
    %v1504 = vsel %vm1502, %v1503, %v1499
    %v1505 = vadd.s32 %v1500, %v1504
    %v1506 = vadd.s32 %v1505, 536870912
    %v1507 = vshrl.u32 %v1506, 30
    %v1508 = vshll.u32 %v1507, 30
    %v1509 = vsub.s32 %v1505, %v1508
    %vm1510 = vcmp.lt.s32.totalorder %v1509, 0
    %v1511 = vsub.s32 0, %v1509
    %v1512 = vsel %vm1510, %v1511, %v1509
    %v1513 = vclz %v1512
    %v1514 = vsub.s32 %v1513, 2
    %vm1515 = vcmp.gt.s32.totalorder 0, %v1514
    %v1516 = vsel %vm1515, 0, %v1514
    %v1517 = vsub.s32 32, %v1516
    %v1518 = vshll.u32 %v1509, %v1516
    %v1519 = vshrl.u32 %v1501, %v1517
    %v1520 = vor.u32 %v1518, %v1519
    %v1521 = vsub.s32 4294967266, %v1516
    %v1522 = vadd.s32 %v1521, 127
    %v1523 = vshll.u32 %v1522, 23
    %v1524 = vor.u32 4788187, %v1523
    %v1525 = vand.u32 2147483647, %v1524
    %v1527 = vcvt.s32.f32 %v1520
    %v1528 = vmul.f32 %v1527, %v1525
    %v1529 = vxor.u32 %v1528, 2147483648
    %v1530 = vsel %vm1409, %v1529, %v1528
    %v1531 = vsub.s32 4, %v1507
    %v1532 = vsel %vm1409, %v1531, %v1507
    %v1533 = vsel %vm1408, %v321, %v1530
    %v1534 = vsel %vm1408, 0, %v1532
    %v1535 = vmul.f32 %v1533, %v1533
    %v1536 = vmul.f32 %v1535, -0.001358992
    %v1537 = vadd.f32 %v1536, 0.041655596
    %v1538 = vmul.f32 %v1535, %v1537
    %v1539 = vadd.f32 %v1538, -0.4999988
    %v1540 = vmul.f32 %v1535, %v1539
    %v1541 = vadd.f32 1.0, %v1540
    %v1542 = vmul.f32 %v1533, %v1533
    %v1543 = vmul.f32 %v1542, -0.00019511016
    %v1544 = vadd.f32 %v1543, 0.008332121
    %v1545 = vmul.f32 %v1542, %v1544
    %v1546 = vadd.f32 %v1545, -0.16666654
    %v1547 = vmul.f32 %v1542, %v1546
    %v1548 = vadd.f32 %v1547, 1.0
    %v1549 = vmul.f32 %v1548, %v1533
    %vm1550 = vweird.f32 %v321
    %v1551 = vadd.s32 %v1534, 3
    %v1552 = vand.u32 %v1551, 3
    %vm1553 = vcmp.lt.s32.totalorder %v1552, 2
    %vm1554 = vcmp.eq.s32.totalorder %v1552, 0
    %v1555 = vxor.u32 %v1549, 2147483648
    %v1556 = vsel %vm1554, %v1541, %v1555
    %vm1557 = vcmp.eq.s32.totalorder %v1552, 2
    %v1558 = vxor.u32 %v1541, 2147483648
    %v1559 = vsel %vm1557, %v1558, %v1549
    %v1560 = vsel %vm1553, %v1556, %v1559
    %v1561 = vsel %vm1550, nan, %v1560
    %v1562 = vmul.f32 %v281, %v1096
    %v1563 = vmul.f32 %v293, %v1251
    %v1564 = vmul.f32 %v305, %v1406
    %v1565 = vmul.f32 %v317, %v1561
    %v1566 = vld [vmem:[#allocation4] sm:$0xff]
    %v1567 = vld [vmem:[#allocation4 + $0x8] sm:$0xff]
    %v1568 = vmul.f32 %v938, 0.1
    %v1569 = vmul.f32 %v939, 0.1
    %v1570 = vmul.f32 %v940, 0.1
    %v1571 = vmul.f32 %v941, 0.1
    %v1572 = vmul.f32 %v1562, 0.1
    %v1573 = vmul.f32 %v1563, 0.1
    %v1574 = vmul.f32 %v1564, 0.1
    %v1575 = vmul.f32 %v1565, 0.1
    %v1584 = vrot.slane %v1569, 6
    %v1585 = vrot.slane %v1570, 4
    %v1586 = vrot.slane %v1571, 2
    %v1587 = vrot.slane %v1573, 6
    %v1588 = vrot.slane %v1574, 4
    %v1589 = vrot.slane %v1575, 2
    %vm1590 = vcmask 1041408
    %v1591 = vsel %vm1590, %v1568, %v1584
    %vm1592 = vcmask 1045508
    %v1593 = vsel %vm1592, %v1585, %v1586
    %vm1594 = vcmask 1043456
    %v1595 = vsel %vm1594, %v1591, %v1593
    %v1596 = vsel %vm1590, %v1572, %v1587
    %v1597 = vsel %vm1592, %v1588, %v1589
    %v1598 = vsel %vm1594, %v1596, %v1597
    %v1601 = vadd.f32 %v1566, %v1595
    %v1602 = vadd.f32 %v1567, %v1598
    %1603 = vst [vmem:[#allocation7] sm:$0xff] %v1601
    %1604 = vst [vmem:[#allocation7 + $0x8] sm:$0xff] %v1602
    // Predicated region
    $region10: #{tpu_custom_call.1} parent=1 // pred_check
      _
    $region11: #{tpu_custom_call.1} parent=1 // pred_check_branch
      %1606 = sbr.rel (0) target = $region13
    $region12: #{tpu_custom_call.1} parent=1 // pred_region
      %1608 = vsyncadd [#allocation6], 0
      %s1610 = sshll.u32 [#allocation7], 4
      %s1611 = int_to_ptr.vmem [resolvable:$true] %s1610
      %s1612 = sshll.u32 %s2, 4
      %s1613 = int_to_ptr.hbm [resolvable:$true] %s1612
      %1615 = dma.vmem_to_hbm [thread:$0]  %s1611, 256, %s1613, [#allocation6]
    $region13: #{tpu_custom_call.1} parent=1 // pred_fallthru
      _
    // Predicated region
    $region14: #{tpu_custom_call.1} parent=1 // pred_check
      _
    $region15: #{tpu_custom_call.1} parent=1 // pred_check_branch
      %1617 = sbr.rel (0) target = $region17
    $region16: #{tpu_custom_call.1} parent=1 // pred_region
      %1619 = dma.done [#allocation6], 256
    $region17: #{tpu_custom_call.1} parent=1 // pred_fallthru
      _
    %1620 = vsyncpa [#allocation5], 1
    %1621 = vsyncpa [#allocation6], 1

</llo_original>
